<compile_context>
chip_gen: v7x
topology: tpu7x:2x2x1
jax: 0.10.0
libtpu: 0.0.40
codegen_flags: <defaults>
</compile_context>

<pallas_src>
import functools

import numpy as np
import jax
import jax.numpy as jnp
from jax import lax
from jax.experimental import pallas as pl
from jax.experimental.pallas import tpu as pltpu


# -----------------------------------------------------------------------------
# Pallas kernel: whole forward pass, all operands resident in VMEM.
# -----------------------------------------------------------------------------
def _ednet_kernel(tok_ref, len_ref, emb_ref, wih_ref, whh_ref, b_ref,
                  h0_ref, c0_ref, wout_ref, bout_ref, out_ref,
                  *, T, B, H, V):
    # B here is the sublane-padded batch (multiple of 8).
    G = 4 * H

    # ---- embedding + input projection, hoisted out of the recurrence --------
    tok = tok_ref[...]                                            # (T*B, 1) int32
    vocab_ids = lax.broadcasted_iota(jnp.int32, (T * B, V), 1)
    onehot = (tok == vocab_ids).astype(jnp.bfloat16)              # 0/1 exact in bf16
    embeds = jnp.dot(onehot, emb_ref[...],                        # emb table is bf16
                     preferred_element_type=jnp.float32)          # (T*B, E) f32 acc
    gates_flat = (jnp.dot(embeds.astype(jnp.bfloat16), wih_ref[...],
                          preferred_element_type=jnp.float32)
                  + b_ref[...])                                   # (T*B, 4H) f32
    # With B % 8 == 0 and 4H % 128 == 0 this reshape is tile-aligned:
    # gates_x[t] is a whole-(8,128)-tile leading-axis select (no relayout).
    gates_x = gates_flat.reshape(T, B, G)

    # ---- hoisted per-step selection masks: step t selects rows with len == t+1
    lens = len_ref[...]                                           # (B, 1) int32
    step1 = lax.broadcasted_iota(jnp.int32, (T, B, 1), 0) + 1
    sel = lens[None, :, :] == step1                               # (T, B, 1) bool
    # Note: a length-0 row never matches, so out_h stays 0 for it (the PyTorch
    # reference would wrap to the last timestep via negative indexing).

    whh = whh_ref[...]                                            # (H, 4H) f32
    h = h0_ref[...]                                               # (B, H)  f32
    c = c0_ref[...]                                               # (B, H)  f32
    out_h = jnp.zeros_like(h)

    # ---- recurrence: only the (B,H)x(H,4H) matmul + 3 full-width EUP pushes
    # per step remain on the serial path. T is small & static -> fully unrolled
    # straight-line code (cross-step scheduler visibility).
    # PyTorch LSTM gate order: i, f, g, o.
    # TODO(synk): for long sequences use lax.fori_loop / a time grid reading the
    # gate slab from VMEM scratch to bound live ranges.
    for t in range(T):
        gates = gates_x[t] + jnp.dot(h, whh, preferred_element_type=jnp.float32)
        sig = jax.nn.sigmoid(gates)                               # one full-width EUP push
        tnh = jnp.tanh(gates)                                     # one full-width EUP push
        i_g = sig[:, 0 * H:1 * H]
        f_g = sig[:, 1 * H:2 * H]
        o_g = sig[:, 3 * H:4 * H]
        g_g = tnh[:, 2 * H:3 * H]
        c = f_g * c + i_g * g_g
        h = o_g * jnp.tanh(c)
        out_h = jnp.where(sel[t], h, out_h)

    # ---- output head (dropout == identity at inference) ---------------------
    out_ref[...] = (jnp.dot(out_h, wout_ref[...],
                            preferred_element_type=jnp.float32)
                    + bout_ref[...])


# -----------------------------------------------------------------------------
# Wrapper: padding / layout glue + pallas_call (single invocation, VMEM-resident)
# -----------------------------------------------------------------------------
def command_ednet_forward(batch_tokens, input_lengths, params, hidden_init):
    """batch_tokens: (B, T) integer tokens. Mirrors Command_ErrorDetectionNet.forward:
    if input_lengths is given, the sequence is truncated to max(input_lengths) and
    the hidden state at t = length-1 is used; otherwise the final hidden state."""
    batch_tokens = jnp.asarray(batch_tokens, jnp.int32)
    if input_lengths is not None:
        batch_length = int(np.max(np.asarray(input_lengths)))
        batch_tokens = batch_tokens[:, :batch_length]
        lens = np.minimum(np.asarray(input_lengths), batch_length).astype(np.int32)
    B, T = batch_tokens.shape
    if input_lengths is None:
        lens = np.full((B,), T, np.int32)

    V, _E = params["embedding"].shape
    H = params["w_hh"].shape[0]
    O = params["b_out"].shape[-1]

    # ---- pad batch to a full sublane group (>= 8, multiple of 8) ------------
    Bp = max(8, ((B + 7) // 8) * 8)
    pad = Bp - B
    tok_p = jnp.pad(batch_tokens, ((0, pad), (0, 0)))             # (Bp, T), pad token 0
    lens_p = np.pad(np.asarray(lens, np.int32), (0, pad))         # padded rows: len 0
    h0_p = jnp.pad(jnp.asarray(hidden_init["h0"], jnp.float32), ((0, pad), (0, 0)))
    c0_p = jnp.pad(jnp.asarray(hidden_init["c0"], jnp.float32), ((0, pad), (0, 0)))

    # time-major flatten: row t*Bp + b holds token batch[b, t] (matches permute(1,0,2))
    tok_tm = jnp.transpose(tok_p).reshape(T * Bp, 1)
    lens2d = jnp.asarray(lens_p, jnp.int32).reshape(Bp, 1)

    # bf16 MXU operands for the hoisted matmuls; recurrence weights stay f32.
    emb_bf16 = params["embedding"].astype(jnp.bfloat16)
    wih_bf16 = params["w_ih"].astype(jnp.bfloat16)

    kernel = functools.partial(_ednet_kernel, T=T, B=Bp, H=H, V=V)
    vmem_spec = pl.BlockSpec(memory_space=pltpu.MemorySpace.VMEM)
    out = pl.pallas_call(
        kernel,
        out_shape=jax.ShapeDtypeStruct((Bp, O), jnp.float32),
        in_specs=[vmem_spec] * 10,
        out_specs=vmem_spec,
        compiler_params=pltpu.CompilerParams(vmem_limit_bytes=32 * 1024 * 1024),
    )(tok_tm, lens2d, emb_bf16, wih_bf16, params["w_hh"], params["b"],
      h0_p, c0_p, params["w_out"], params["b_out"])
    return out[:B]


# -----------------------------------------------------------------------------
# Deterministic parameter construction (mimics PyTorch default init scales)
# -----------------------------------------------------------------------------
def init_params(key, vocab_size, embedding_dim, hidden_dim, output_size=2):
    keys = iter(jax.random.split(key, 8))
    s = 1.0 / float(np.sqrt(hidden_dim))

    def unif(shape, scale=s):
        return jax.random.uniform(next(keys), shape, jnp.float32, -scale, scale)

    p = {}
    p["embedding"] = jax.random.normal(next(keys), (vocab_size, embedding_dim),
                                       jnp.float32)                  # nn.Embedding ~ N(0,1)
    p["w_ih"] = unif((embedding_dim, 4 * hidden_dim))                # weight_ih_l0^T (i,f,g,o)
    p["w_hh"] = unif((hidden_dim, 4 * hidden_dim))                   # weight_hh_l0^T
    p["b"] = unif((1, 4 * hidden_dim)) + unif((1, 4 * hidden_dim))   # b_ih + b_hh
    p["w_out"] = unif((hidden_dim, output_size))                     # hidden2out.weight^T
    p["b_out"] = unif((1, output_size))                              # hidden2out.bias
    return p


def init_hidden(key, batch_size, hidden_dim):
    # PyTorch init_hidden draws torch.randn each forward; here: deterministic normals.
    kh, kc = jax.random.split(key)
    return {"h0": jax.random.normal(kh, (batch_size, hidden_dim), jnp.float32),
            "c0": jax.random.normal(kc, (batch_size, hidden_dim), jnp.float32)}


# -----------------------------------------------------------------------------
# Pure-JAX reference (f32 end-to-end, for correctness check)
# -----------------------------------------------------------------------------
def reference_forward(batch_tokens, input_lengths, params, hidden_init):
    batch_tokens = jnp.asarray(batch_tokens, jnp.int32)
    if input_lengths is not None:
        batch_length = int(np.max(np.asarray(input_lengths)))
        batch_tokens = batch_tokens[:, :batch_length]
        lens = np.minimum(np.asarray(input_lengths), batch_length).astype(np.int32)
    B, T = batch_tokens.shape
    if input_lengths is None:
        lens = np.full((B,), T, np.int32)

    H = params["w_hh"].shape[0]
    embeds = params["embedding"][batch_tokens]                 # (B, T, E)
    x_tm = jnp.transpose(embeds, (1, 0, 2))                    # (T, B, E)

    def step(carry, x_t):
        h, c = carry
        gates = (jnp.dot(x_t, params["w_ih"], preferred_element_type=jnp.float32)
                 + jnp.dot(h, params["w_hh"], preferred_element_type=jnp.float32)
                 + params["b"])
        i_g = jax.nn.sigmoid(gates[:, 0 * H:1 * H])
        f_g = jax.nn.sigmoid(gates[:, 1 * H:2 * H])
        g_g = jnp.tanh(gates[:, 2 * H:3 * H])
        o_g = jax.nn.sigmoid(gates[:, 3 * H:4 * H])
        c_new = f_g * c + i_g * g_g
        h_new = o_g * jnp.tanh(c_new)
        return (h_new, c_new), h_new

    (_, _), hs = lax.scan(step, (hidden_init["h0"], hidden_init["c0"]), x_tm)
    out_h = hs[jnp.asarray(lens) - 1, jnp.arange(B)]           # (B, H)
    return (jnp.dot(out_h, params["w_out"], preferred_element_type=jnp.float32)
            + params["b_out"])


# -----------------------------------------------------------------------------
if __name__ == "__main__":
    B, SEQ, V, E, H, O = 2, 10, 32, 16, 32, 2   # batch, seq, vocab, embed, hidden, classes
    key = jax.random.PRNGKey(0)
    k_x, k_p, k_h = jax.random.split(key, 3)

    batch_tokens = jax.random.randint(k_x, (B, SEQ), 0, V, jnp.int32)
    input_lengths = np.array([8, 5], dtype=np.int32)   # exercises truncation + per-length select

    params = init_params(k_p, V, E, H, O)
    hidden = init_hidden(k_h, B, H)

    # Tolerance is relaxed vs the f32 reference because the embedding table / w_ih
    # are fed to the MXU in bf16 (f32 accumulation); structural errors would be
    # orders of magnitude larger.
    TOL = 3e-2

    # lengths path
    out = command_ednet_forward(batch_tokens, input_lengths, params, hidden)
    out = jax.block_until_ready(out)
    assert out.shape == (B, O)
    ref = reference_forward(batch_tokens, input_lengths, params, hidden)
    np.testing.assert_allclose(np.asarray(out), np.asarray(ref), atol=TOL, rtol=TOL)

    # input_lengths=None path (final hidden state ht[-1])
    out_none = jax.block_until_ready(
        command_ednet_forward(batch_tokens, None, params, hidden))
    ref_none = reference_forward(batch_tokens, None, params, hidden)
    np.testing.assert_allclose(np.asarray(out_none), np.asarray(ref_none),
                               atol=TOL, rtol=TOL)

    print("KERNEL_OK")
</pallas_src>

<mosaic_0001>
module attributes {stable_mosaic.version = 11 : i64} {
  func.func @_ednet_kernel(%arg0: memref<64x1xi32, #tpu.memory_space<vmem>>, %arg1: memref<8x1xi32, #tpu.memory_space<vmem>>, %arg2: memref<32x16xbf16, #tpu.memory_space<vmem>>, %arg3: memref<16x128xbf16, #tpu.memory_space<vmem>>, %arg4: memref<32x128xf32, #tpu.memory_space<vmem>>, %arg5: memref<1x128xf32, #tpu.memory_space<vmem>>, %arg6: memref<8x32xf32, #tpu.memory_space<vmem>>, %arg7: memref<8x32xf32, #tpu.memory_space<vmem>>, %arg8: memref<32x2xf32, #tpu.memory_space<vmem>>, %arg9: memref<1x2xf32, #tpu.memory_space<vmem>>, %arg10: memref<8x2xf32, #tpu.memory_space<vmem>>) attributes {dimension_semantics = [], scalar_prefetch = 0 : i64, scratch_operands = 0 : i64, tpu.core_type = #tpu.core_type<tc>} {
    %c0 = arith.constant 0 : index
    %c0_0 = arith.constant 0 : index
    %0 = vector.load %arg0[%c0, %c0_0] : memref<64x1xi32, #tpu.memory_space<vmem>>, vector<64x1xi32>
    %1 = tpu.iota {dimensions = array<i32: 1>} : vector<64x32xi32>
    %2 = vector.broadcast %0 : vector<64x1xi32> to vector<64x32xi32>
    %3 = arith.cmpi eq, %2, %1 : vector<64x32xi32>
    %4 = arith.extui %3 : vector<64x32xi1> to vector<64x32xi32>
    %5 = arith.sitofp %4 : vector<64x32xi32> to vector<64x32xf32>
    %6 = arith.truncf %5 : vector<64x32xf32> to vector<64x32xbf16>
    %c0_1 = arith.constant 0 : index
    %c0_2 = arith.constant 0 : index
    %7 = vector.load %arg2[%c0_1, %c0_2] : memref<32x16xbf16, #tpu.memory_space<vmem>>, vector<32x16xbf16>
    %cst = arith.constant dense<0.000000e+00> : vector<64x16xf32>
    %8 = tpu.matmul %6, %7, %cst {dimension_numbers = #tpu.dot_dimension_numbers<[1], [0], [0], [1], [0, 0, 1, 1], [], []>} : vector<64x32xbf16>, vector<32x16xbf16>, vector<64x16xf32> -> vector<64x16xf32>
    %9 = arith.truncf %8 : vector<64x16xf32> to vector<64x16xbf16>
    %c0_3 = arith.constant 0 : index
    %c0_4 = arith.constant 0 : index
    %10 = vector.load %arg3[%c0_3, %c0_4] : memref<16x128xbf16, #tpu.memory_space<vmem>>, vector<16x128xbf16>
    %cst_5 = arith.constant dense<0.000000e+00> : vector<64x128xf32>
    %11 = tpu.matmul %9, %10, %cst_5 {dimension_numbers = #tpu.dot_dimension_numbers<[1], [0], [0], [1], [0, 0, 1, 1], [], []>} : vector<64x16xbf16>, vector<16x128xbf16>, vector<64x128xf32> -> vector<64x128xf32>
    %c0_6 = arith.constant 0 : index
    %c0_7 = arith.constant 0 : index
    %12 = vector.load %arg5[%c0_6, %c0_7] : memref<1x128xf32, #tpu.memory_space<vmem>>, vector<1x128xf32>
    %13 = vector.broadcast %12 : vector<1x128xf32> to vector<64x128xf32>
    %14 = arith.addf %11, %13 : vector<64x128xf32>
    %15 = vector.shape_cast %14 : vector<64x128xf32> to vector<8x8x128xf32>
    %c0_8 = arith.constant 0 : index
    %c0_9 = arith.constant 0 : index
    %16 = vector.load %arg1[%c0_8, %c0_9] : memref<8x1xi32, #tpu.memory_space<vmem>>, vector<8x1xi32>
    %17 = tpu.iota {dimensions = array<i32: 0>} : vector<8x8x1xi32>
    %c1_i32 = arith.constant 1 : i32
    %18 = vector.broadcast %c1_i32 : i32 to vector<8x8x1xi32>
    %19 = arith.addi %17, %18 : vector<8x8x1xi32>
    %20 = vector.shape_cast %16 : vector<8x1xi32> to vector<1x8x1xi32>
    %21 = vector.broadcast %20 : vector<1x8x1xi32> to vector<8x8x1xi32>
    %22 = arith.cmpi eq, %21, %19 : vector<8x8x1xi32>
    %c0_10 = arith.constant 0 : index
    %c0_11 = arith.constant 0 : index
    %23 = vector.load %arg4[%c0_10, %c0_11] : memref<32x128xf32, #tpu.memory_space<vmem>>, vector<32x128xf32>
    %c0_12 = arith.constant 0 : index
    %c0_13 = arith.constant 0 : index
    %24 = vector.load %arg6[%c0_12, %c0_13] : memref<8x32xf32, #tpu.memory_space<vmem>>, vector<8x32xf32>
    %c0_14 = arith.constant 0 : index
    %c0_15 = arith.constant 0 : index
    %25 = vector.load %arg7[%c0_14, %c0_15] : memref<8x32xf32, #tpu.memory_space<vmem>>, vector<8x32xf32>
    %cst_16 = arith.constant 0.000000e+00 : f32
    %26 = vector.broadcast %cst_16 : f32 to vector<8x32xf32>
    %27 = vector.extract_strided_slice %15 {offsets = [0, 0, 0], sizes = [1, 8, 128], strides = [1, 1, 1]} : vector<8x8x128xf32> to vector<1x8x128xf32>
    %28 = vector.shape_cast %27 : vector<1x8x128xf32> to vector<8x128xf32>
    %cst_17 = arith.constant dense<0.000000e+00> : vector<8x128xf32>
    %29 = tpu.matmul %24, %23, %cst_17 {dimension_numbers = #tpu.dot_dimension_numbers<[1], [0], [0], [1], [0, 0, 1, 1], [], []>} : vector<8x32xf32>, vector<32x128xf32>, vector<8x128xf32> -> vector<8x128xf32>
    %30 = arith.addf %28, %29 : vector<8x128xf32>
    %31 = arith.negf %30 : vector<8x128xf32>
    %32 = math.exp %31 : vector<8x128xf32>
    %cst_18 = arith.constant 1.000000e+00 : f32
    %33 = vector.broadcast %cst_18 : f32 to vector<8x128xf32>
    %34 = arith.addf %33, %32 : vector<8x128xf32>
    %35 = arith.divf %33, %34 : vector<8x128xf32>
    %36 = math.tanh %30 : vector<8x128xf32>
    %37 = vector.extract_strided_slice %35 {offsets = [0, 0], sizes = [8, 32], strides = [1, 1]} : vector<8x128xf32> to vector<8x32xf32>
    %38 = vector.extract_strided_slice %35 {offsets = [0, 32], sizes = [8, 32], strides = [1, 1]} : vector<8x128xf32> to vector<8x32xf32>
    %39 = vector.extract_strided_slice %35 {offsets = [0, 96], sizes = [8, 32], strides = [1, 1]} : vector<8x128xf32> to vector<8x32xf32>
    %40 = vector.extract_strided_slice %36 {offsets = [0, 64], sizes = [8, 32], strides = [1, 1]} : vector<8x128xf32> to vector<8x32xf32>
    %41 = arith.mulf %38, %25 : vector<8x32xf32>
    %42 = arith.mulf %37, %40 : vector<8x32xf32>
    %43 = arith.addf %41, %42 : vector<8x32xf32>
    %44 = math.tanh %43 : vector<8x32xf32>
    %45 = arith.mulf %39, %44 : vector<8x32xf32>
    %46 = vector.extract_strided_slice %22 {offsets = [0, 0, 0], sizes = [1, 8, 1], strides = [1, 1, 1]} : vector<8x8x1xi1> to vector<1x8x1xi1>
    %47 = vector.shape_cast %46 : vector<1x8x1xi1> to vector<8x1xi1>
    %48 = vector.shape_cast %47 : vector<8x1xi1> to vector<8x1xi1>
    %49 = vector.broadcast %48 : vector<8x1xi1> to vector<8x32xi1>
    %50 = arith.select %49, %45, %26 : vector<8x32xi1>, vector<8x32xf32>
    %51 = vector.extract_strided_slice %15 {offsets = [1, 0, 0], sizes = [1, 8, 128], strides = [1, 1, 1]} : vector<8x8x128xf32> to vector<1x8x128xf32>
    %52 = vector.shape_cast %51 : vector<1x8x128xf32> to vector<8x128xf32>
    %cst_19 = arith.constant dense<0.000000e+00> : vector<8x128xf32>
    %53 = tpu.matmul %45, %23, %cst_19 {dimension_numbers = #tpu.dot_dimension_numbers<[1], [0], [0], [1], [0, 0, 1, 1], [], []>} : vector<8x32xf32>, vector<32x128xf32>, vector<8x128xf32> -> vector<8x128xf32>
    %54 = arith.addf %52, %53 : vector<8x128xf32>
    %55 = arith.negf %54 : vector<8x128xf32>
    %56 = math.exp %55 : vector<8x128xf32>
    %cst_20 = arith.constant 1.000000e+00 : f32
    %57 = vector.broadcast %cst_20 : f32 to vector<8x128xf32>
    %58 = arith.addf %57, %56 : vector<8x128xf32>
    %59 = arith.divf %57, %58 : vector<8x128xf32>
    %60 = math.tanh %54 : vector<8x128xf32>
    %61 = vector.extract_strided_slice %59 {offsets = [0, 0], sizes = [8, 32], strides = [1, 1]} : vector<8x128xf32> to vector<8x32xf32>
    %62 = vector.extract_strided_slice %59 {offsets = [0, 32], sizes = [8, 32], strides = [1, 1]} : vector<8x128xf32> to vector<8x32xf32>
    %63 = vector.extract_strided_slice %59 {offsets = [0, 96], sizes = [8, 32], strides = [1, 1]} : vector<8x128xf32> to vector<8x32xf32>
    %64 = vector.extract_strided_slice %60 {offsets = [0, 64], sizes = [8, 32], strides = [1, 1]} : vector<8x128xf32> to vector<8x32xf32>
    %65 = arith.mulf %62, %43 : vector<8x32xf32>
    %66 = arith.mulf %61, %64 : vector<8x32xf32>
    %67 = arith.addf %65, %66 : vector<8x32xf32>
    %68 = math.tanh %67 : vector<8x32xf32>
    %69 = arith.mulf %63, %68 : vector<8x32xf32>
    %70 = vector.extract_strided_slice %22 {offsets = [1, 0, 0], sizes = [1, 8, 1], strides = [1, 1, 1]} : vector<8x8x1xi1> to vector<1x8x1xi1>
    %71 = vector.shape_cast %70 : vector<1x8x1xi1> to vector<8x1xi1>
    %72 = vector.shape_cast %71 : vector<8x1xi1> to vector<8x1xi1>
    %73 = vector.broadcast %72 : vector<8x1xi1> to vector<8x32xi1>
    %74 = arith.select %73, %69, %50 : vector<8x32xi1>, vector<8x32xf32>
    %75 = vector.extract_strided_slice %15 {offsets = [2, 0, 0], sizes = [1, 8, 128], strides = [1, 1, 1]} : vector<8x8x128xf32> to vector<1x8x128xf32>
    %76 = vector.shape_cast %75 : vector<1x8x128xf32> to vector<8x128xf32>
    %cst_21 = arith.constant dense<0.000000e+00> : vector<8x128xf32>
    %77 = tpu.matmul %69, %23, %cst_21 {dimension_numbers = #tpu.dot_dimension_numbers<[1], [0], [0], [1], [0, 0, 1, 1], [], []>} : vector<8x32xf32>, vector<32x128xf32>, vector<8x128xf32> -> vector<8x128xf32>
    %78 = arith.addf %76, %77 : vector<8x128xf32>
    %79 = arith.negf %78 : vector<8x128xf32>
    %80 = math.exp %79 : vector<8x128xf32>
    %cst_22 = arith.constant 1.000000e+00 : f32
    %81 = vector.broadcast %cst_22 : f32 to vector<8x128xf32>
    %82 = arith.addf %81, %80 : vector<8x128xf32>
    %83 = arith.divf %81, %82 : vector<8x128xf32>
    %84 = math.tanh %78 : vector<8x128xf32>
    %85 = vector.extract_strided_slice %83 {offsets = [0, 0], sizes = [8, 32], strides = [1, 1]} : vector<8x128xf32> to vector<8x32xf32>
    %86 = vector.extract_strided_slice %83 {offsets = [0, 32], sizes = [8, 32], strides = [1, 1]} : vector<8x128xf32> to vector<8x32xf32>
    %87 = vector.extract_strided_slice %83 {offsets = [0, 96], sizes = [8, 32], strides = [1, 1]} : vector<8x128xf32> to vector<8x32xf32>
    %88 = vector.extract_strided_slice %84 {offsets = [0, 64], sizes = [8, 32], strides = [1, 1]} : vector<8x128xf32> to vector<8x32xf32>
    %89 = arith.mulf %86, %67 : vector<8x32xf32>
    %90 = arith.mulf %85, %88 : vector<8x32xf32>
    %91 = arith.addf %89, %90 : vector<8x32xf32>
    %92 = math.tanh %91 : vector<8x32xf32>
    %93 = arith.mulf %87, %92 : vector<8x32xf32>
    %94 = vector.extract_strided_slice %22 {offsets = [2, 0, 0], sizes = [1, 8, 1], strides = [1, 1, 1]} : vector<8x8x1xi1> to vector<1x8x1xi1>
    %95 = vector.shape_cast %94 : vector<1x8x1xi1> to vector<8x1xi1>
    %96 = vector.shape_cast %95 : vector<8x1xi1> to vector<8x1xi1>
    %97 = vector.broadcast %96 : vector<8x1xi1> to vector<8x32xi1>
    %98 = arith.select %97, %93, %74 : vector<8x32xi1>, vector<8x32xf32>
    %99 = vector.extract_strided_slice %15 {offsets = [3, 0, 0], sizes = [1, 8, 128], strides = [1, 1, 1]} : vector<8x8x128xf32> to vector<1x8x128xf32>
    %100 = vector.shape_cast %99 : vector<1x8x128xf32> to vector<8x128xf32>
    %cst_23 = arith.constant dense<0.000000e+00> : vector<8x128xf32>
    %101 = tpu.matmul %93, %23, %cst_23 {dimension_numbers = #tpu.dot_dimension_numbers<[1], [0], [0], [1], [0, 0, 1, 1], [], []>} : vector<8x32xf32>, vector<32x128xf32>, vector<8x128xf32> -> vector<8x128xf32>
    %102 = arith.addf %100, %101 : vector<8x128xf32>
    %103 = arith.negf %102 : vector<8x128xf32>
    %104 = math.exp %103 : vector<8x128xf32>
    %cst_24 = arith.constant 1.000000e+00 : f32
    %105 = vector.broadcast %cst_24 : f32 to vector<8x128xf32>
    %106 = arith.addf %105, %104 : vector<8x128xf32>
    %107 = arith.divf %105, %106 : vector<8x128xf32>
    %108 = math.tanh %102 : vector<8x128xf32>
    %109 = vector.extract_strided_slice %107 {offsets = [0, 0], sizes = [8, 32], strides = [1, 1]} : vector<8x128xf32> to vector<8x32xf32>
    %110 = vector.extract_strided_slice %107 {offsets = [0, 32], sizes = [8, 32], strides = [1, 1]} : vector<8x128xf32> to vector<8x32xf32>
    %111 = vector.extract_strided_slice %107 {offsets = [0, 96], sizes = [8, 32], strides = [1, 1]} : vector<8x128xf32> to vector<8x32xf32>
    %112 = vector.extract_strided_slice %108 {offsets = [0, 64], sizes = [8, 32], strides = [1, 1]} : vector<8x128xf32> to vector<8x32xf32>
    %113 = arith.mulf %110, %91 : vector<8x32xf32>
    %114 = arith.mulf %109, %112 : vector<8x32xf32>
    %115 = arith.addf %113, %114 : vector<8x32xf32>
    %116 = math.tanh %115 : vector<8x32xf32>
    %117 = arith.mulf %111, %116 : vector<8x32xf32>
    %118 = vector.extract_strided_slice %22 {offsets = [3, 0, 0], sizes = [1, 8, 1], strides = [1, 1, 1]} : vector<8x8x1xi1> to vector<1x8x1xi1>
    %119 = vector.shape_cast %118 : vector<1x8x1xi1> to vector<8x1xi1>
    %120 = vector.shape_cast %119 : vector<8x1xi1> to vector<8x1xi1>
    %121 = vector.broadcast %120 : vector<8x1xi1> to vector<8x32xi1>
    %122 = arith.select %121, %117, %98 : vector<8x32xi1>, vector<8x32xf32>
    %123 = vector.extract_strided_slice %15 {offsets = [4, 0, 0], sizes = [1, 8, 128], strides = [1, 1, 1]} : vector<8x8x128xf32> to vector<1x8x128xf32>
    %124 = vector.shape_cast %123 : vector<1x8x128xf32> to vector<8x128xf32>
    %cst_25 = arith.constant dense<0.000000e+00> : vector<8x128xf32>
    %125 = tpu.matmul %117, %23, %cst_25 {dimension_numbers = #tpu.dot_dimension_numbers<[1], [0], [0], [1], [0, 0, 1, 1], [], []>} : vector<8x32xf32>, vector<32x128xf32>, vector<8x128xf32> -> vector<8x128xf32>
    %126 = arith.addf %124, %125 : vector<8x128xf32>
    %127 = arith.negf %126 : vector<8x128xf32>
    %128 = math.exp %127 : vector<8x128xf32>
    %cst_26 = arith.constant 1.000000e+00 : f32
    %129 = vector.broadcast %cst_26 : f32 to vector<8x128xf32>
    %130 = arith.addf %129, %128 : vector<8x128xf32>
    %131 = arith.divf %129, %130 : vector<8x128xf32>
    %132 = math.tanh %126 : vector<8x128xf32>
    %133 = vector.extract_strided_slice %131 {offsets = [0, 0], sizes = [8, 32], strides = [1, 1]} : vector<8x128xf32> to vector<8x32xf32>
    %134 = vector.extract_strided_slice %131 {offsets = [0, 32], sizes = [8, 32], strides = [1, 1]} : vector<8x128xf32> to vector<8x32xf32>
    %135 = vector.extract_strided_slice %131 {offsets = [0, 96], sizes = [8, 32], strides = [1, 1]} : vector<8x128xf32> to vector<8x32xf32>
    %136 = vector.extract_strided_slice %132 {offsets = [0, 64], sizes = [8, 32], strides = [1, 1]} : vector<8x128xf32> to vector<8x32xf32>
    %137 = arith.mulf %134, %115 : vector<8x32xf32>
    %138 = arith.mulf %133, %136 : vector<8x32xf32>
    %139 = arith.addf %137, %138 : vector<8x32xf32>
    %140 = math.tanh %139 : vector<8x32xf32>
    %141 = arith.mulf %135, %140 : vector<8x32xf32>
    %142 = vector.extract_strided_slice %22 {offsets = [4, 0, 0], sizes = [1, 8, 1], strides = [1, 1, 1]} : vector<8x8x1xi1> to vector<1x8x1xi1>
    %143 = vector.shape_cast %142 : vector<1x8x1xi1> to vector<8x1xi1>
    %144 = vector.shape_cast %143 : vector<8x1xi1> to vector<8x1xi1>
    %145 = vector.broadcast %144 : vector<8x1xi1> to vector<8x32xi1>
    %146 = arith.select %145, %141, %122 : vector<8x32xi1>, vector<8x32xf32>
    %147 = vector.extract_strided_slice %15 {offsets = [5, 0, 0], sizes = [1, 8, 128], strides = [1, 1, 1]} : vector<8x8x128xf32> to vector<1x8x128xf32>
    %148 = vector.shape_cast %147 : vector<1x8x128xf32> to vector<8x128xf32>
    %cst_27 = arith.constant dense<0.000000e+00> : vector<8x128xf32>
    %149 = tpu.matmul %141, %23, %cst_27 {dimension_numbers = #tpu.dot_dimension_numbers<[1], [0], [0], [1], [0, 0, 1, 1], [], []>} : vector<8x32xf32>, vector<32x128xf32>, vector<8x128xf32> -> vector<8x128xf32>
    %150 = arith.addf %148, %149 : vector<8x128xf32>
    %151 = arith.negf %150 : vector<8x128xf32>
    %152 = math.exp %151 : vector<8x128xf32>
    %cst_28 = arith.constant 1.000000e+00 : f32
    %153 = vector.broadcast %cst_28 : f32 to vector<8x128xf32>
    %154 = arith.addf %153, %152 : vector<8x128xf32>
    %155 = arith.divf %153, %154 : vector<8x128xf32>
    %156 = math.tanh %150 : vector<8x128xf32>
    %157 = vector.extract_strided_slice %155 {offsets = [0, 0], sizes = [8, 32], strides = [1, 1]} : vector<8x128xf32> to vector<8x32xf32>
    %158 = vector.extract_strided_slice %155 {offsets = [0, 32], sizes = [8, 32], strides = [1, 1]} : vector<8x128xf32> to vector<8x32xf32>
    %159 = vector.extract_strided_slice %155 {offsets = [0, 96], sizes = [8, 32], strides = [1, 1]} : vector<8x128xf32> to vector<8x32xf32>
    %160 = vector.extract_strided_slice %156 {offsets = [0, 64], sizes = [8, 32], strides = [1, 1]} : vector<8x128xf32> to vector<8x32xf32>
    %161 = arith.mulf %158, %139 : vector<8x32xf32>
    %162 = arith.mulf %157, %160 : vector<8x32xf32>
    %163 = arith.addf %161, %162 : vector<8x32xf32>
    %164 = math.tanh %163 : vector<8x32xf32>
    %165 = arith.mulf %159, %164 : vector<8x32xf32>
    %166 = vector.extract_strided_slice %22 {offsets = [5, 0, 0], sizes = [1, 8, 1], strides = [1, 1, 1]} : vector<8x8x1xi1> to vector<1x8x1xi1>
    %167 = vector.shape_cast %166 : vector<1x8x1xi1> to vector<8x1xi1>
    %168 = vector.shape_cast %167 : vector<8x1xi1> to vector<8x1xi1>
    %169 = vector.broadcast %168 : vector<8x1xi1> to vector<8x32xi1>
    %170 = arith.select %169, %165, %146 : vector<8x32xi1>, vector<8x32xf32>
    %171 = vector.extract_strided_slice %15 {offsets = [6, 0, 0], sizes = [1, 8, 128], strides = [1, 1, 1]} : vector<8x8x128xf32> to vector<1x8x128xf32>
    %172 = vector.shape_cast %171 : vector<1x8x128xf32> to vector<8x128xf32>
    %cst_29 = arith.constant dense<0.000000e+00> : vector<8x128xf32>
    %173 = tpu.matmul %165, %23, %cst_29 {dimension_numbers = #tpu.dot_dimension_numbers<[1], [0], [0], [1], [0, 0, 1, 1], [], []>} : vector<8x32xf32>, vector<32x128xf32>, vector<8x128xf32> -> vector<8x128xf32>
    %174 = arith.addf %172, %173 : vector<8x128xf32>
    %175 = arith.negf %174 : vector<8x128xf32>
    %176 = math.exp %175 : vector<8x128xf32>
    %cst_30 = arith.constant 1.000000e+00 : f32
    %177 = vector.broadcast %cst_30 : f32 to vector<8x128xf32>
    %178 = arith.addf %177, %176 : vector<8x128xf32>
    %179 = arith.divf %177, %178 : vector<8x128xf32>
    %180 = math.tanh %174 : vector<8x128xf32>
    %181 = vector.extract_strided_slice %179 {offsets = [0, 0], sizes = [8, 32], strides = [1, 1]} : vector<8x128xf32> to vector<8x32xf32>
    %182 = vector.extract_strided_slice %179 {offsets = [0, 32], sizes = [8, 32], strides = [1, 1]} : vector<8x128xf32> to vector<8x32xf32>
    %183 = vector.extract_strided_slice %179 {offsets = [0, 96], sizes = [8, 32], strides = [1, 1]} : vector<8x128xf32> to vector<8x32xf32>
    %184 = vector.extract_strided_slice %180 {offsets = [0, 64], sizes = [8, 32], strides = [1, 1]} : vector<8x128xf32> to vector<8x32xf32>
    %185 = arith.mulf %182, %163 : vector<8x32xf32>
    %186 = arith.mulf %181, %184 : vector<8x32xf32>
    %187 = arith.addf %185, %186 : vector<8x32xf32>
    %188 = math.tanh %187 : vector<8x32xf32>
    %189 = arith.mulf %183, %188 : vector<8x32xf32>
    %190 = vector.extract_strided_slice %22 {offsets = [6, 0, 0], sizes = [1, 8, 1], strides = [1, 1, 1]} : vector<8x8x1xi1> to vector<1x8x1xi1>
    %191 = vector.shape_cast %190 : vector<1x8x1xi1> to vector<8x1xi1>
    %192 = vector.shape_cast %191 : vector<8x1xi1> to vector<8x1xi1>
    %193 = vector.broadcast %192 : vector<8x1xi1> to vector<8x32xi1>
    %194 = arith.select %193, %189, %170 : vector<8x32xi1>, vector<8x32xf32>
    %195 = vector.extract_strided_slice %15 {offsets = [7, 0, 0], sizes = [1, 8, 128], strides = [1, 1, 1]} : vector<8x8x128xf32> to vector<1x8x128xf32>
    %196 = vector.shape_cast %195 : vector<1x8x128xf32> to vector<8x128xf32>
    %cst_31 = arith.constant dense<0.000000e+00> : vector<8x128xf32>
    %197 = tpu.matmul %189, %23, %cst_31 {dimension_numbers = #tpu.dot_dimension_numbers<[1], [0], [0], [1], [0, 0, 1, 1], [], []>} : vector<8x32xf32>, vector<32x128xf32>, vector<8x128xf32> -> vector<8x128xf32>
    %198 = arith.addf %196, %197 : vector<8x128xf32>
    %199 = arith.negf %198 : vector<8x128xf32>
    %200 = math.exp %199 : vector<8x128xf32>
    %cst_32 = arith.constant 1.000000e+00 : f32
    %201 = vector.broadcast %cst_32 : f32 to vector<8x128xf32>
    %202 = arith.addf %201, %200 : vector<8x128xf32>
    %203 = arith.divf %201, %202 : vector<8x128xf32>
    %204 = math.tanh %198 : vector<8x128xf32>
    %205 = vector.extract_strided_slice %203 {offsets = [0, 0], sizes = [8, 32], strides = [1, 1]} : vector<8x128xf32> to vector<8x32xf32>
    %206 = vector.extract_strided_slice %203 {offsets = [0, 32], sizes = [8, 32], strides = [1, 1]} : vector<8x128xf32> to vector<8x32xf32>
    %207 = vector.extract_strided_slice %203 {offsets = [0, 96], sizes = [8, 32], strides = [1, 1]} : vector<8x128xf32> to vector<8x32xf32>
    %208 = vector.extract_strided_slice %204 {offsets = [0, 64], sizes = [8, 32], strides = [1, 1]} : vector<8x128xf32> to vector<8x32xf32>
    %209 = arith.mulf %206, %187 : vector<8x32xf32>
    %210 = arith.mulf %205, %208 : vector<8x32xf32>
    %211 = arith.addf %209, %210 : vector<8x32xf32>
    %212 = math.tanh %211 : vector<8x32xf32>
    %213 = arith.mulf %207, %212 : vector<8x32xf32>
    %214 = vector.extract_strided_slice %22 {offsets = [7, 0, 0], sizes = [1, 8, 1], strides = [1, 1, 1]} : vector<8x8x1xi1> to vector<1x8x1xi1>
    %215 = vector.shape_cast %214 : vector<1x8x1xi1> to vector<8x1xi1>
    %216 = vector.shape_cast %215 : vector<8x1xi1> to vector<8x1xi1>
    %217 = vector.broadcast %216 : vector<8x1xi1> to vector<8x32xi1>
    %218 = arith.select %217, %213, %194 : vector<8x32xi1>, vector<8x32xf32>
    %c0_33 = arith.constant 0 : index
    %c0_34 = arith.constant 0 : index
    %219 = vector.load %arg8[%c0_33, %c0_34] : memref<32x2xf32, #tpu.memory_space<vmem>>, vector<32x2xf32>
    %cst_35 = arith.constant dense<0.000000e+00> : vector<8x2xf32>
    %220 = tpu.matmul %218, %219, %cst_35 {dimension_numbers = #tpu.dot_dimension_numbers<[1], [0], [0], [1], [0, 0, 1, 1], [], []>} : vector<8x32xf32>, vector<32x2xf32>, vector<8x2xf32> -> vector<8x2xf32>
    %c0_36 = arith.constant 0 : index
    %c0_37 = arith.constant 0 : index
    %221 = vector.load %arg9[%c0_36, %c0_37] : memref<1x2xf32, #tpu.memory_space<vmem>>, vector<1x2xf32>
    %222 = vector.broadcast %221 : vector<1x2xf32> to vector<8x2xf32>
    %223 = arith.addf %220, %222 : vector<8x2xf32>
    %c0_38 = arith.constant 0 : index
    %c0_39 = arith.constant 0 : index
    %224 = vector.load %arg10[%c0_38, %c0_39] : memref<8x2xf32, #tpu.memory_space<vmem>>, vector<8x2xf32>
    tpu.vector_store %arg10[%c0_38, %c0_39], %223 {strides = array<i32>} : memref<8x2xf32, #tpu.memory_space<vmem>>, vector<8x2xf32>,
    return
  }
}

</mosaic_0001>

<llo_original>
// kernel: tpu_custom_call.1
$region0: #{tpu_custom_call.1}
  #allocation0 [shape = 'u32[]', space=smem, size = 0x4, offset = 0x4, fixed_abs, tag = 'smem constant byte address 0x4 - core index']
  #allocation1 [shape = 'u32[144,128]{1,0:T(1,128)}', space=vmem, size = 0x12000, scoped, tag = 'internal scratch']
  %s0 = inlined_call_operand.vmem [shape: s32[64,1], index: 0, kind: input, shape index: {}]
  %s1 = inlined_call_operand.vmem [shape: s32[8,1], index: 1, kind: input, shape index: {}]
  %s2 = inlined_call_operand.vmem [shape: bf16[32,16], index: 2, kind: input, shape index: {}]
  %s3 = inlined_call_operand.vmem [shape: bf16[16,128], index: 3, kind: input, shape index: {}]
  %s4 = inlined_call_operand.vmem [shape: f32[32,128], index: 4, kind: input, shape index: {}]
  %s5 = inlined_call_operand.vmem [shape: f32[1,128], index: 5, kind: input, shape index: {}]
  %s6 = inlined_call_operand.vmem [shape: f32[8,32], index: 6, kind: input, shape index: {}]
  %s7 = inlined_call_operand.vmem [shape: f32[8,32], index: 7, kind: input, shape index: {}]
  %s8 = inlined_call_operand.vmem [shape: f32[32,2], index: 8, kind: input, shape index: {}]
  %s9 = inlined_call_operand.vmem [shape: f32[1,2], index: 9, kind: input, shape index: {}]
  %s10 = inlined_call_operand.vmem [shape: f32[8,2], index: 10, kind: output, shape index: {}]
  %s11 = sld [smem:[#allocation0]]
  $region50: #{tpu_custom_call.1} parent=0
    _
  %s13 = ssub.s32 1, %s11
  %s14 = scalar_select 0, %s13, %s11
  // Predicated region
  $region2: #{tpu_custom_call.1} parent=0 // pred_check
    _
  $region3: #{tpu_custom_call.1} parent=0 // pred_check_branch
    %16 = sbr.rel (0) target = $region5
  $region4: #{tpu_custom_call.1} parent=0 // pred_region
    _
  $region5: #{tpu_custom_call.1} parent=0 // pred_fallthru
    _
  // Predicated region
  $region6: #{tpu_custom_call.1} parent=0 // pred_check
    _
  $region7: #{tpu_custom_call.1} parent=0 // pred_check_branch
    %18 = sbr.rel (0) target = $region9
  $region8: #{tpu_custom_call.1} parent=0 // pred_region
    _
  $region9: #{tpu_custom_call.1} parent=0 // pred_fallthru
    _
  // Predicated region
  $region10: #{tpu_custom_call.1} parent=0 // pred_check
    _
  $region11: #{tpu_custom_call.1} parent=0 // pred_check_branch
    %20 = sbr.rel (0) target = $region13
  $region12: #{tpu_custom_call.1} parent=0 // pred_region
    _
  $region13: #{tpu_custom_call.1} parent=0 // pred_fallthru
    _
  // Predicated region
  $region14: #{tpu_custom_call.1} parent=0 // pred_check
    _
  $region15: #{tpu_custom_call.1} parent=0 // pred_check_branch
    %22 = sbr.rel (0) target = $region17
  $region16: #{tpu_custom_call.1} parent=0 // pred_region
    _
  $region17: #{tpu_custom_call.1} parent=0 // pred_fallthru
    _
  // Predicated region
  $region18: #{tpu_custom_call.1} parent=0 // pred_check
    _
  $region19: #{tpu_custom_call.1} parent=0 // pred_check_branch
    %24 = sbr.rel (0) target = $region21
  $region20: #{tpu_custom_call.1} parent=0 // pred_region
    _
  $region21: #{tpu_custom_call.1} parent=0 // pred_fallthru
    _
  // Predicated region
  $region22: #{tpu_custom_call.1} parent=0 // pred_check
    _
  $region23: #{tpu_custom_call.1} parent=0 // pred_check_branch
    %26 = sbr.rel (0) target = $region25
  $region24: #{tpu_custom_call.1} parent=0 // pred_region
    _
  $region25: #{tpu_custom_call.1} parent=0 // pred_fallthru
    _
  // Predicated region
  $region26: #{tpu_custom_call.1} parent=0 // pred_check
    _
  $region27: #{tpu_custom_call.1} parent=0 // pred_check_branch
    %28 = sbr.rel (0) target = $region29
  $region28: #{tpu_custom_call.1} parent=0 // pred_region
    _
  $region29: #{tpu_custom_call.1} parent=0 // pred_fallthru
    _
  // Predicated region
  $region30: #{tpu_custom_call.1} parent=0 // pred_check
    _
  $region31: #{tpu_custom_call.1} parent=0 // pred_check_branch
    %30 = sbr.rel (0) target = $region33
  $region32: #{tpu_custom_call.1} parent=0 // pred_region
    _
  $region33: #{tpu_custom_call.1} parent=0 // pred_fallthru
    _
  // Predicated region
  $region34: #{tpu_custom_call.1} parent=0 // pred_check
    _
  $region35: #{tpu_custom_call.1} parent=0 // pred_check_branch
    %32 = sbr.rel (0) target = $region37
  $region36: #{tpu_custom_call.1} parent=0 // pred_region
    _
  $region37: #{tpu_custom_call.1} parent=0 // pred_fallthru
    _
  // Predicated region
  $region38: #{tpu_custom_call.1} parent=0 // pred_check
    _
  $region39: #{tpu_custom_call.1} parent=0 // pred_check_branch
    %34 = sbr.rel (0) target = $region41
  $region40: #{tpu_custom_call.1} parent=0 // pred_region
    _
  $region41: #{tpu_custom_call.1} parent=0 // pred_fallthru
    _
  %v36 = vld [vmem:[%s0] sm:$0xff]
  %v37 = vld [vmem:[%s0 + $0x8] sm:$0xff]
  %v38 = vld [vmem:[%s0 + $0x10] sm:$0xff]
  %v39 = vld [vmem:[%s0 + $0x18] sm:$0xff]
  %v40 = vld [vmem:[%s0 + $0x20] sm:$0xff]
  %v41 = vld [vmem:[%s0 + $0x28] sm:$0xff]
  %v42 = vld [vmem:[%s0 + $0x30] sm:$0xff]
  %v43 = vld [vmem:[%s0 + $0x38] sm:$0xff]
  %v44 = vlaneseq
  %v45 = vand.u32 %v44, 127
  %46 = vset.pattern.permute.xlu0 0
  %47 = vperm.xlu0 %46, %v36
  %v48 = vpop.permute.xlu0 %47
  %49 = vset.pattern.permute.xlu0 0
  %50 = vperm.xlu0 %49, %v37
  %v51 = vpop.permute.xlu0 %50
  %52 = vset.pattern.permute.xlu0 0
  %53 = vperm.xlu0 %52, %v38
  %v54 = vpop.permute.xlu0 %53
  %55 = vset.pattern.permute.xlu0 0
  %56 = vperm.xlu0 %55, %v39
  %v57 = vpop.permute.xlu0 %56
  %58 = vset.pattern.permute.xlu0 0
  %59 = vperm.xlu0 %58, %v40
  %v60 = vpop.permute.xlu0 %59
  %61 = vset.pattern.permute.xlu0 0
  %62 = vperm.xlu0 %61, %v41
  %v63 = vpop.permute.xlu0 %62
  %64 = vset.pattern.permute.xlu0 0
  %65 = vperm.xlu0 %64, %v42
  %v66 = vpop.permute.xlu0 %65
  %67 = vset.pattern.permute.xlu0 0
  %68 = vperm.xlu0 %67, %v43
  %v69 = vpop.permute.xlu0 %68
  %vm70 = vcmp.eq.s32.totalorder %v48, %v45
  %vm71 = vcmp.eq.s32.totalorder %v51, %v45
  %vm72 = vcmp.eq.s32.totalorder %v54, %v45
  %vm73 = vcmp.eq.s32.totalorder %v57, %v45
  %vm74 = vcmp.eq.s32.totalorder %v60, %v45
  %vm75 = vcmp.eq.s32.totalorder %v63, %v45
  %vm76 = vcmp.eq.s32.totalorder %v66, %v45
  %vm77 = vcmp.eq.s32.totalorder %v69, %v45
  %v78 = vsel %vm70, 1, 0
  %v79 = vsel %vm71, 1, 0
  %v80 = vsel %vm72, 1, 0
  %v81 = vsel %vm73, 1, 0
  %v82 = vsel %vm74, 1, 0
  %v83 = vsel %vm75, 1, 0
  %v84 = vsel %vm76, 1, 0
  %v85 = vsel %vm77, 1, 0
  %v86 = vcvt.s32.f32 %v78
  %v87 = vcvt.s32.f32 %v79
  %v88 = vcvt.s32.f32 %v80
  %v89 = vcvt.s32.f32 %v81
  %v90 = vcvt.s32.f32 %v82
  %v91 = vcvt.s32.f32 %v83
  %v92 = vcvt.s32.f32 %v84
  %v93 = vcvt.s32.f32 %v85
  %v94 = vpack.c.bf16 %v87, %v86
  %v95 = vpack.c.bf16 %v89, %v88
  %v96 = vpack.c.bf16 %v91, %v90
  %v97 = vpack.c.bf16 %v93, %v92
  %v98 = vld [vmem:[%s2] sm:$0xf]
  %v99 = vld [vmem:[%s2 + $0x4] sm:$0xf]
  %v100 = vld [vmem:[%s2 + $0x8] sm:$0xf]
  %v101 = vld [vmem:[%s2 + $0xc] sm:$0xf]
  %v106 = vunpack.c.l.b16 %v98
  %v107 = vunpack.c.l.b16 %v99
  %v108 = vunpack.c.l.b16 %v100
  %v109 = vunpack.c.l.b16 %v101
  %v110 = vpack.c.b16 %v107, %v106
  %v111 = vpack.c.b16 %v109, %v108
  %vm114 = vcmask 261120
  %v116 = vsel %vm114, %v94, 0
  %v119 = vsel %vm114, %v95, 0
  %v122 = vsel %vm114, %v96, 0
  %v125 = vsel %vm114, %v97, 0
  %127 = vmatprep.subr.bf16.mxu0 0
  %128 = vmatpush1.bf16.msra.mxu0 %v110
  %129 = vmatprep.subr.bf16.mxu0 0
  %130 = vmatpush1.bf16.msra.mxu0 %v111
  %131 = vmatprep.subr.bf16.mxu0 0
  %132 = vmatpush1.bf16.msra.mxu0 0
  %133 = vmatprep.subr.bf16.mxu0 0
  %134 = vmatpush1.bf16.msra.mxu0 0
  %135 = vmatprep.subr.bf16.mxu0 0
  %136 = vmatpush1.bf16.msra.mxu0 0
  %137 = vmatprep.subr.bf16.mxu0 0
  %138 = vmatpush1.bf16.msra.mxu0 0
  %139 = vmatprep.subr.bf16.mxu0 0
  %140 = vmatpush1.bf16.msra.mxu0 0
  %141 = vmatprep.subr.bf16.mxu0 0
  %142 = vmatpush1.bf16.msra.mxu0 0
  %143 = vmatprep.subr.bf16.mxu0 0
  %144 = vmatpush1.bf16.msra.mxu0 0
  %145 = vmatprep.subr.bf16.mxu0 0
  %146 = vmatpush1.bf16.msra.mxu0 0
  %147 = vmatprep.subr.bf16.mxu0 0
  %148 = vmatpush1.bf16.msra.mxu0 0
  %149 = vmatprep.subr.bf16.mxu0 0
  %150 = vmatpush1.bf16.msra.mxu0 0
  %151 = vmatprep.subr.bf16.mxu0 0
  %152 = vmatpush1.bf16.msra.mxu0 0
  %153 = vmatprep.subr.bf16.mxu0 0
  %154 = vmatpush1.bf16.msra.mxu0 0
  %155 = vmatprep.subr.bf16.mxu0 0
  %156 = vmatpush1.bf16.msra.mxu0 0
  %157 = vmatprep.subr.bf16.mxu0 0
  %158 = vmatpush1.bf16.msra.mxu0 0
  %159 = vmatprep.mubr.bf16.mxu0 0
  %160 = vmatmul.mubr.bf16.gmra.mrb[0].mxu0 %v116
  %v161 = vpop.f32.mrb[0].mxu0
  %v162 = vadd.f32 0.0, %v161
  %v163 = vpop.f32.mrb[0].mxu0
  %v164 = vpop.f32.mrb[0].mxu0
  %v165 = vadd.f32 0.0, %v164
  %v166 = vpop.f32.mrb[0].mxu0
  %167 = vmatprep.mubr.bf16.mxu0 0
  %168 = vmatmul.mubr.bf16.gmra.mrb[0].mxu0 %v119
  %v169 = vpop.f32.mrb[0].mxu0
  %v170 = vadd.f32 0.0, %v169
  %v171 = vpop.f32.mrb[0].mxu0
  %v172 = vpop.f32.mrb[0].mxu0
  %v173 = vadd.f32 0.0, %v172
  %v174 = vpop.f32.mrb[0].mxu0
  %175 = vmatprep.mubr.bf16.mxu0 0
  %176 = vmatmul.mubr.bf16.gmra.mrb[0].mxu0 %v122
  %v177 = vpop.f32.mrb[0].mxu0
  %v178 = vadd.f32 0.0, %v177
  %v179 = vpop.f32.mrb[0].mxu0
  %v180 = vpop.f32.mrb[0].mxu0
  %v181 = vadd.f32 0.0, %v180
  %v182 = vpop.f32.mrb[0].mxu0
  %183 = vmatprep.mubr.bf16.mxu0 0
  %184 = vmatmul.mubr.bf16.gmra.mrb[0].mxu0 %v125
  %v185 = vpop.f32.mrb[0].mxu0
  %v186 = vadd.f32 0.0, %v185
  %v187 = vpop.f32.mrb[0].mxu0
  %v188 = vpop.f32.mrb[0].mxu0
  %v189 = vadd.f32 0.0, %v188
  %v190 = vpop.f32.mrb[0].mxu0
  %191 = vdwg.mxu0
  %v192 = vpack.c.bf16 %v165, %v162
  %v193 = vpack.c.bf16 %v173, %v170
  %v194 = vpack.c.bf16 %v181, %v178
  %v195 = vpack.c.bf16 %v189, %v186
  %v196 = vld [vmem:[%s3] sm:$0xf]
  %v197 = vld [vmem:[%s3 + $0x4] sm:$0xf]
  %v198 = vld [vmem:[%s5] sm:$0x1]
  %v200 = vlaneseq
  %v201 = vshrl.u32 %v200, 7
  %v202 = vsub.s32 0, %v201
  %v203 = vrot.slane %v198, %v202
  %v207 = vunpack.c.l.b16 %v196
  %v208 = vunpack.c.l.b16 %v197
  %v209 = vpack.c.b16 %v208, %v207
  %vm211 = vcmask 130048
  %v213 = vsel %vm211, %v192, 0
  %v216 = vsel %vm211, %v193, 0
  %v219 = vsel %vm211, %v194, 0
  %v222 = vsel %vm211, %v195, 0
  %224 = vmatprep.subr.bf16.mxu0 0
  %225 = vmatpush1.bf16.msra.mxu0 %v209
  %226 = vmatprep.subr.bf16.mxu0 0
  %227 = vmatpush1.bf16.msra.mxu0 0
  %228 = vmatprep.subr.bf16.mxu0 0
  %229 = vmatpush1.bf16.msra.mxu0 0
  %230 = vmatprep.subr.bf16.mxu0 0
  %231 = vmatpush1.bf16.msra.mxu0 0
  %232 = vmatprep.subr.bf16.mxu0 0
  %233 = vmatpush1.bf16.msra.mxu0 0
  %234 = vmatprep.subr.bf16.mxu0 0
  %235 = vmatpush1.bf16.msra.mxu0 0
  %236 = vmatprep.subr.bf16.mxu0 0
  %237 = vmatpush1.bf16.msra.mxu0 0
  %238 = vmatprep.subr.bf16.mxu0 0
  %239 = vmatpush1.bf16.msra.mxu0 0
  %240 = vmatprep.subr.bf16.mxu0 0
  %241 = vmatpush1.bf16.msra.mxu0 0
  %242 = vmatprep.subr.bf16.mxu0 0
  %243 = vmatpush1.bf16.msra.mxu0 0
  %244 = vmatprep.subr.bf16.mxu0 0
  %245 = vmatpush1.bf16.msra.mxu0 0
  %246 = vmatprep.subr.bf16.mxu0 0
  %247 = vmatpush1.bf16.msra.mxu0 0
  %248 = vmatprep.subr.bf16.mxu0 0
  %249 = vmatpush1.bf16.msra.mxu0 0
  %250 = vmatprep.subr.bf16.mxu0 0
  %251 = vmatpush1.bf16.msra.mxu0 0
  %252 = vmatprep.subr.bf16.mxu0 0
  %253 = vmatpush1.bf16.msra.mxu0 0
  %254 = vmatprep.subr.bf16.mxu0 0
  %255 = vmatpush1.bf16.msra.mxu0 0
  %256 = vmatprep.mubr.bf16.mxu0 0
  %257 = vmatmul.mubr.bf16.gmra.mrb[0].mxu0 %v213
  %v258 = vpop.f32.mrb[0].mxu0
  %v259 = vadd.f32 %v203, %v258
  %v260 = vpop.f32.mrb[0].mxu0
  %v261 = vpop.f32.mrb[0].mxu0
  %v262 = vadd.f32 %v203, %v261
  %v263 = vpop.f32.mrb[0].mxu0
  %264 = vmatprep.mubr.bf16.mxu0 0
  %265 = vmatmul.mubr.bf16.gmra.mrb[0].mxu0 %v216
  %v266 = vpop.f32.mrb[0].mxu0
  %v267 = vadd.f32 %v203, %v266
  %v268 = vpop.f32.mrb[0].mxu0
  %v269 = vpop.f32.mrb[0].mxu0
  %v270 = vadd.f32 %v203, %v269
  %v271 = vpop.f32.mrb[0].mxu0
  %272 = vmatprep.mubr.bf16.mxu0 0
  %273 = vmatmul.mubr.bf16.gmra.mrb[0].mxu0 %v219
  %v274 = vpop.f32.mrb[0].mxu0
  %v275 = vadd.f32 %v203, %v274
  %v276 = vpop.f32.mrb[0].mxu0
  %v277 = vpop.f32.mrb[0].mxu0
  %v278 = vadd.f32 %v203, %v277
  %v279 = vpop.f32.mrb[0].mxu0
  %280 = vmatprep.mubr.bf16.mxu0 0
  %281 = vmatmul.mubr.bf16.gmra.mrb[0].mxu0 %v222
  %v282 = vpop.f32.mrb[0].mxu0
  %v283 = vadd.f32 %v203, %v282
  %v284 = vpop.f32.mrb[0].mxu0
  %v285 = vpop.f32.mrb[0].mxu0
  %v286 = vadd.f32 %v203, %v285
  %v287 = vpop.f32.mrb[0].mxu0
  %288 = vdwg.mxu0
  %v289 = vld [vmem:[%s1] sm:$0xff]
  %vm290 = vcmp.eq.s32.totalorder %v289, 1
  %vm291 = vcmp.eq.s32.totalorder %v289, 2
  %vm292 = vcmp.eq.s32.totalorder %v289, 3
  %vm293 = vcmp.eq.s32.totalorder %v289, 4
  %vm294 = vcmp.eq.s32.totalorder %v289, 5
  %vm295 = vcmp.eq.s32.totalorder %v289, 6
  %vm296 = vcmp.eq.s32.totalorder %v289, 7
  %vm297 = vcmp.eq.s32.totalorder %v289, 8
  %v298 = vld [vmem:[%s4] sm:$0xff]
  %v299 = vld [vmem:[%s4 + $0x8] sm:$0xff]
  %v300 = vld [vmem:[%s4 + $0x10] sm:$0xff]
  %v301 = vld [vmem:[%s4 + $0x18] sm:$0xff]
  %v302 = vld [vmem:[%s6] sm:$0xff]
  %v303 = vld [vmem:[%s7] sm:$0xff]
  %v305 = vsel %vm114, %v302, 0
  %307 = vmatprep.subr.mxu0 0.0
  %308 = vmatpush1.msra.mxu0 %v298
  %309 = vmatprep.subr.mxu0 0.0
  %310 = vmatpush1.msra.mxu0 %v299
  %311 = vmatprep.subr.mxu0 0.0
  %312 = vmatpush1.msra.mxu0 %v300
  %313 = vmatprep.subr.mxu0 0.0
  %314 = vmatpush1.msra.mxu0 %v301
  %315 = vmatprep.subr.mxu0 0.0
  %316 = vmatpush1.msra.mxu0 0.0
  %317 = vmatprep.subr.mxu0 0.0
  %318 = vmatpush1.msra.mxu0 0.0
  %319 = vmatprep.subr.mxu0 0.0
  %320 = vmatpush1.msra.mxu0 0.0
  %321 = vmatprep.subr.mxu0 0.0
  %322 = vmatpush1.msra.mxu0 0.0
  %323 = vmatprep.subr.mxu0 0.0
  %324 = vmatpush1.msra.mxu0 0.0
  %325 = vmatprep.subr.mxu0 0.0
  %326 = vmatpush1.msra.mxu0 0.0
  %327 = vmatprep.subr.mxu0 0.0
  %328 = vmatpush1.msra.mxu0 0.0
  %329 = vmatprep.subr.mxu0 0.0
  %330 = vmatpush1.msra.mxu0 0.0
  %331 = vmatprep.subr.mxu0 0.0
  %332 = vmatpush1.msra.mxu0 0.0
  %333 = vmatprep.subr.mxu0 0.0
  %334 = vmatpush1.msra.mxu0 0.0
  %335 = vmatprep.subr.mxu0 0.0
  %336 = vmatpush1.msra.mxu0 0.0
  %337 = vmatprep.subr.mxu0 0.0
  %338 = vmatpush1.msra.mxu0 0.0
  %339 = vmatprep.subr.mxu0 0.0
  %340 = vmatpush1.msra.mxu0 0.0
  %341 = vmatprep.subr.mxu0 0.0
  %342 = vmatpush1.msra.mxu0 0.0
  %343 = vmatprep.subr.mxu0 0.0
  %344 = vmatpush1.msra.mxu0 0.0
  %345 = vmatprep.subr.mxu0 0.0
  %346 = vmatpush1.msra.mxu0 0.0
  %347 = vmatprep.subr.mxu0 0.0
  %348 = vmatpush1.msra.mxu0 0.0
  %349 = vmatprep.subr.mxu0 0.0
  %350 = vmatpush1.msra.mxu0 0.0
  %351 = vmatprep.subr.mxu0 0.0
  %352 = vmatpush1.msra.mxu0 0.0
  %353 = vmatprep.subr.mxu0 0.0
  %354 = vmatpush1.msra.mxu0 0.0
  %355 = vmatprep.subr.mxu0 0.0
  %356 = vmatpush1.msra.mxu0 0.0
  %357 = vmatprep.subr.mxu0 0.0
  %358 = vmatpush1.msra.mxu0 0.0
  %359 = vmatprep.subr.mxu0 0.0
  %360 = vmatpush1.msra.mxu0 0.0
  %361 = vmatprep.subr.mxu0 0.0
  %362 = vmatpush1.msra.mxu0 0.0
  %363 = vmatprep.subr.mxu0 0.0
  %364 = vmatpush1.msra.mxu0 0.0
  %365 = vmatprep.subr.mxu0 0.0
  %366 = vmatpush1.msra.mxu0 0.0
  %367 = vmatprep.subr.mxu0 0.0
  %368 = vmatpush1.msra.mxu0 0.0
  %369 = vmatprep.subr.mxu0 0.0
  %370 = vmatpush1.msra.mxu0 0.0
  %371 = vmatprep.mubr.f32.mxu0 0.0
  %372 = vmatmul.mubr.f32.gmra.mrb[0].mxu0 %v305
  %v373 = vpop.f32.mrb[0].mxu0
  %v374 = vadd.f32 0.0, %v373
  %v375 = vpop.f32.mrb[0].mxu0
  %376 = vdwg.mxu0
  %v377 = vadd.f32 %v259, %v374
  %v378 = vxor.u32 %v377, 2147483648
  %v379 = vmul.f32 %v378, 1.442695
  %v380 = vpow.pop %v379
  %v381 = vadd.f32 %v380, 1.0
  %v382 = vrcp.pop %v381
  %v383 = vmul.f32 1.0, %v382
  %v384 = vtanh.pop %v377
  %386 = vrot.lane.b32.xlu0 %v303, 32
  %v387 = vpop.permute.xlu0 %386
  %v389 = vmul.f32 %v383, %v387
  %391 = vrot.lane.b32.xlu0 %v384, 64
  %v392 = vpop.permute.xlu0 %391
  %v394 = vmul.f32 %v383, %v392
  %396 = vrot.lane.b32.xlu0 %v394, 32
  %v397 = vpop.permute.xlu0 %396
  %v399 = vadd.f32 %v389, %v397
  %v400 = vtanh.pop %v399
  %402 = vrot.lane.b32.xlu0 %v400, 64
  %v403 = vpop.permute.xlu0 %402
  %v405 = vmul.f32 %v383, %v403
  %v406 = vsel %vm290, 1, 0
  %407 = vset.pattern.permute.xlu0 0
  %408 = vperm.xlu0 %407, %v406
  %v409 = vpop.permute.xlu0 %408
  %vm410 = vcmp.eq.s32.totalorder %v409, 1
  %v411 = vsel %vm410, %v405, 0.0
  %413 = vrot.lane.b32.xlu0 %v405, 32
  %v414 = vpop.permute.xlu0 %413
  %v415 = vsel %vm114, %v414, 0
  %417 = vmatprep.subr.mxu0 0.0
  %418 = vmatpush1.msra.mxu0 %v298
  %419 = vmatprep.subr.mxu0 0.0
  %420 = vmatpush1.msra.mxu0 %v299
  %421 = vmatprep.subr.mxu0 0.0
  %422 = vmatpush1.msra.mxu0 %v300
  %423 = vmatprep.subr.mxu0 0.0
  %424 = vmatpush1.msra.mxu0 %v301
  %425 = vmatprep.subr.mxu0 0.0
  %426 = vmatpush1.msra.mxu0 0.0
  %427 = vmatprep.subr.mxu0 0.0
  %428 = vmatpush1.msra.mxu0 0.0
  %429 = vmatprep.subr.mxu0 0.0
  %430 = vmatpush1.msra.mxu0 0.0
  %431 = vmatprep.subr.mxu0 0.0
  %432 = vmatpush1.msra.mxu0 0.0
  %433 = vmatprep.subr.mxu0 0.0
  %434 = vmatpush1.msra.mxu0 0.0
  %435 = vmatprep.subr.mxu0 0.0
  %436 = vmatpush1.msra.mxu0 0.0
  %437 = vmatprep.subr.mxu0 0.0
  %438 = vmatpush1.msra.mxu0 0.0
  %439 = vmatprep.subr.mxu0 0.0
  %440 = vmatpush1.msra.mxu0 0.0
  %441 = vmatprep.subr.mxu0 0.0
  %442 = vmatpush1.msra.mxu0 0.0
  %443 = vmatprep.subr.mxu0 0.0
  %444 = vmatpush1.msra.mxu0 0.0
  %445 = vmatprep.subr.mxu0 0.0
  %446 = vmatpush1.msra.mxu0 0.0
  %447 = vmatprep.subr.mxu0 0.0
  %448 = vmatpush1.msra.mxu0 0.0
  %449 = vmatprep.subr.mxu0 0.0
  %450 = vmatpush1.msra.mxu0 0.0
  %451 = vmatprep.subr.mxu0 0.0
  %452 = vmatpush1.msra.mxu0 0.0
  %453 = vmatprep.subr.mxu0 0.0
  %454 = vmatpush1.msra.mxu0 0.0
  %455 = vmatprep.subr.mxu0 0.0
  %456 = vmatpush1.msra.mxu0 0.0
  %457 = vmatprep.subr.mxu0 0.0
  %458 = vmatpush1.msra.mxu0 0.0
  %459 = vmatprep.subr.mxu0 0.0
  %460 = vmatpush1.msra.mxu0 0.0
  %461 = vmatprep.subr.mxu0 0.0
  %462 = vmatpush1.msra.mxu0 0.0
  %463 = vmatprep.subr.mxu0 0.0
  %464 = vmatpush1.msra.mxu0 0.0
  %465 = vmatprep.subr.mxu0 0.0
  %466 = vmatpush1.msra.mxu0 0.0
  %467 = vmatprep.subr.mxu0 0.0
  %468 = vmatpush1.msra.mxu0 0.0
  %469 = vmatprep.subr.mxu0 0.0
  %470 = vmatpush1.msra.mxu0 0.0
  %471 = vmatprep.subr.mxu0 0.0
  %472 = vmatpush1.msra.mxu0 0.0
  %473 = vmatprep.subr.mxu0 0.0
  %474 = vmatpush1.msra.mxu0 0.0
  %475 = vmatprep.subr.mxu0 0.0
  %476 = vmatpush1.msra.mxu0 0.0
  %477 = vmatprep.subr.mxu0 0.0
  %478 = vmatpush1.msra.mxu0 0.0
  %479 = vmatprep.subr.mxu0 0.0
  %480 = vmatpush1.msra.mxu0 0.0
  %481 = vmatprep.mubr.f32.mxu0 0.0
  %482 = vmatmul.mubr.f32.gmra.mrb[0].mxu0 %v415
  %v483 = vpop.f32.mrb[0].mxu0
  %v484 = vadd.f32 0.0, %v483
  %v485 = vpop.f32.mrb[0].mxu0
  %486 = vdwg.mxu0
  %v487 = vadd.f32 %v262, %v484
  %v488 = vxor.u32 %v487, 2147483648
  %v489 = vmul.f32 %v488, 1.442695
  %v490 = vpow.pop %v489
  %v491 = vadd.f32 %v490, 1.0
  %v492 = vrcp.pop %v491
  %v493 = vmul.f32 1.0, %v492
  %v494 = vtanh.pop %v487
  %v495 = vmul.f32 %v493, %v399
  %497 = vrot.lane.b32.xlu0 %v494, 64
  %v498 = vpop.permute.xlu0 %497
  %v500 = vmul.f32 %v493, %v498
  %502 = vrot.lane.b32.xlu0 %v500, 32
  %v503 = vpop.permute.xlu0 %502
  %v505 = vadd.f32 %v495, %v503
  %v506 = vtanh.pop %v505
  %508 = vrot.lane.b32.xlu0 %v506, 64
  %v509 = vpop.permute.xlu0 %508
  %v511 = vmul.f32 %v493, %v509
  %v512 = vsel %vm291, 1, 0
  %513 = vset.pattern.permute.xlu0 0
  %514 = vperm.xlu0 %513, %v512
  %v515 = vpop.permute.xlu0 %514
  %vm516 = vcmp.eq.s32.totalorder %v515, 1
  %v517 = vsel %vm516, %v511, %v411
  %519 = vrot.lane.b32.xlu0 %v511, 32
  %v520 = vpop.permute.xlu0 %519
  %v521 = vsel %vm114, %v520, 0
  %523 = vmatprep.subr.mxu0 0.0
  %524 = vmatpush1.msra.mxu0 %v298
  %525 = vmatprep.subr.mxu0 0.0
  %526 = vmatpush1.msra.mxu0 %v299
  %527 = vmatprep.subr.mxu0 0.0
  %528 = vmatpush1.msra.mxu0 %v300
  %529 = vmatprep.subr.mxu0 0.0
  %530 = vmatpush1.msra.mxu0 %v301
  %531 = vmatprep.subr.mxu0 0.0
  %532 = vmatpush1.msra.mxu0 0.0
  %533 = vmatprep.subr.mxu0 0.0
  %534 = vmatpush1.msra.mxu0 0.0
  %535 = vmatprep.subr.mxu0 0.0
  %536 = vmatpush1.msra.mxu0 0.0
  %537 = vmatprep.subr.mxu0 0.0
  %538 = vmatpush1.msra.mxu0 0.0
  %539 = vmatprep.subr.mxu0 0.0
  %540 = vmatpush1.msra.mxu0 0.0
  %541 = vmatprep.subr.mxu0 0.0
  %542 = vmatpush1.msra.mxu0 0.0
  %543 = vmatprep.subr.mxu0 0.0
  %544 = vmatpush1.msra.mxu0 0.0
  %545 = vmatprep.subr.mxu0 0.0
  %546 = vmatpush1.msra.mxu0 0.0
  %547 = vmatprep.subr.mxu0 0.0
  %548 = vmatpush1.msra.mxu0 0.0
  %549 = vmatprep.subr.mxu0 0.0
  %550 = vmatpush1.msra.mxu0 0.0
  %551 = vmatprep.subr.mxu0 0.0
  %552 = vmatpush1.msra.mxu0 0.0
  %553 = vmatprep.subr.mxu0 0.0
  %554 = vmatpush1.msra.mxu0 0.0
  %555 = vmatprep.subr.mxu0 0.0
  %556 = vmatpush1.msra.mxu0 0.0
  %557 = vmatprep.subr.mxu0 0.0
  %558 = vmatpush1.msra.mxu0 0.0
  %559 = vmatprep.subr.mxu0 0.0
  %560 = vmatpush1.msra.mxu0 0.0
  %561 = vmatprep.subr.mxu0 0.0
  %562 = vmatpush1.msra.mxu0 0.0
  %563 = vmatprep.subr.mxu0 0.0
  %564 = vmatpush1.msra.mxu0 0.0
  %565 = vmatprep.subr.mxu0 0.0
  %566 = vmatpush1.msra.mxu0 0.0
  %567 = vmatprep.subr.mxu0 0.0
  %568 = vmatpush1.msra.mxu0 0.0
  %569 = vmatprep.subr.mxu0 0.0
  %570 = vmatpush1.msra.mxu0 0.0
  %571 = vmatprep.subr.mxu0 0.0
  %572 = vmatpush1.msra.mxu0 0.0
  %573 = vmatprep.subr.mxu0 0.0
  %574 = vmatpush1.msra.mxu0 0.0
  %575 = vmatprep.subr.mxu0 0.0
  %576 = vmatpush1.msra.mxu0 0.0
  %577 = vmatprep.subr.mxu0 0.0
  %578 = vmatpush1.msra.mxu0 0.0
  %579 = vmatprep.subr.mxu0 0.0
  %580 = vmatpush1.msra.mxu0 0.0
  %581 = vmatprep.subr.mxu0 0.0
  %582 = vmatpush1.msra.mxu0 0.0
  %583 = vmatprep.subr.mxu0 0.0
  %584 = vmatpush1.msra.mxu0 0.0
  %585 = vmatprep.subr.mxu0 0.0
  %586 = vmatpush1.msra.mxu0 0.0
  %587 = vmatprep.mubr.f32.mxu0 0.0
  %588 = vmatmul.mubr.f32.gmra.mrb[0].mxu0 %v521
  %v589 = vpop.f32.mrb[0].mxu0
  %v590 = vadd.f32 0.0, %v589
  %v591 = vpop.f32.mrb[0].mxu0
  %592 = vdwg.mxu0
  %v593 = vadd.f32 %v267, %v590
  %v594 = vxor.u32 %v593, 2147483648
  %v595 = vmul.f32 %v594, 1.442695
  %v596 = vpow.pop %v595
  %v597 = vadd.f32 %v596, 1.0
  %v598 = vrcp.pop %v597
  %v599 = vmul.f32 1.0, %v598
  %v600 = vtanh.pop %v593
  %v601 = vmul.f32 %v599, %v505
  %603 = vrot.lane.b32.xlu0 %v600, 64
  %v604 = vpop.permute.xlu0 %603
  %v606 = vmul.f32 %v599, %v604
  %608 = vrot.lane.b32.xlu0 %v606, 32
  %v609 = vpop.permute.xlu0 %608
  %v611 = vadd.f32 %v601, %v609
  %v612 = vtanh.pop %v611
  %614 = vrot.lane.b32.xlu0 %v612, 64
  %v615 = vpop.permute.xlu0 %614
  %v617 = vmul.f32 %v599, %v615
  %v618 = vsel %vm292, 1, 0
  %619 = vset.pattern.permute.xlu0 0
  %620 = vperm.xlu0 %619, %v618
  %v621 = vpop.permute.xlu0 %620
  %vm622 = vcmp.eq.s32.totalorder %v621, 1
  %v623 = vsel %vm622, %v617, %v517
  %625 = vrot.lane.b32.xlu0 %v617, 32
  %v626 = vpop.permute.xlu0 %625
  %v627 = vsel %vm114, %v626, 0
  %629 = vmatprep.subr.mxu0 0.0
  %630 = vmatpush1.msra.mxu0 %v298
  %631 = vmatprep.subr.mxu0 0.0
  %632 = vmatpush1.msra.mxu0 %v299
  %633 = vmatprep.subr.mxu0 0.0
  %634 = vmatpush1.msra.mxu0 %v300
  %635 = vmatprep.subr.mxu0 0.0
  %636 = vmatpush1.msra.mxu0 %v301
  %637 = vmatprep.subr.mxu0 0.0
  %638 = vmatpush1.msra.mxu0 0.0
  %639 = vmatprep.subr.mxu0 0.0
  %640 = vmatpush1.msra.mxu0 0.0
  %641 = vmatprep.subr.mxu0 0.0
  %642 = vmatpush1.msra.mxu0 0.0
  %643 = vmatprep.subr.mxu0 0.0
  %644 = vmatpush1.msra.mxu0 0.0
  %645 = vmatprep.subr.mxu0 0.0
  %646 = vmatpush1.msra.mxu0 0.0
  %647 = vmatprep.subr.mxu0 0.0
  %648 = vmatpush1.msra.mxu0 0.0
  %649 = vmatprep.subr.mxu0 0.0
  %650 = vmatpush1.msra.mxu0 0.0
  %651 = vmatprep.subr.mxu0 0.0
  %652 = vmatpush1.msra.mxu0 0.0
  %653 = vmatprep.subr.mxu0 0.0
  %654 = vmatpush1.msra.mxu0 0.0
  %655 = vmatprep.subr.mxu0 0.0
  %656 = vmatpush1.msra.mxu0 0.0
  %657 = vmatprep.subr.mxu0 0.0
  %658 = vmatpush1.msra.mxu0 0.0
  %659 = vmatprep.subr.mxu0 0.0
  %660 = vmatpush1.msra.mxu0 0.0
  %661 = vmatprep.subr.mxu0 0.0
  %662 = vmatpush1.msra.mxu0 0.0
  %663 = vmatprep.subr.mxu0 0.0
  %664 = vmatpush1.msra.mxu0 0.0
  %665 = vmatprep.subr.mxu0 0.0
  %666 = vmatpush1.msra.mxu0 0.0
  %667 = vmatprep.subr.mxu0 0.0
  %668 = vmatpush1.msra.mxu0 0.0
  %669 = vmatprep.subr.mxu0 0.0
  %670 = vmatpush1.msra.mxu0 0.0
  %671 = vmatprep.subr.mxu0 0.0
  %672 = vmatpush1.msra.mxu0 0.0
  %673 = vmatprep.subr.mxu0 0.0
  %674 = vmatpush1.msra.mxu0 0.0
  %675 = vmatprep.subr.mxu0 0.0
  %676 = vmatpush1.msra.mxu0 0.0
  %677 = vmatprep.subr.mxu0 0.0
  %678 = vmatpush1.msra.mxu0 0.0
  %679 = vmatprep.subr.mxu0 0.0
  %680 = vmatpush1.msra.mxu0 0.0
  %681 = vmatprep.subr.mxu0 0.0
  %682 = vmatpush1.msra.mxu0 0.0
  %683 = vmatprep.subr.mxu0 0.0
  %684 = vmatpush1.msra.mxu0 0.0
  %685 = vmatprep.subr.mxu0 0.0
  %686 = vmatpush1.msra.mxu0 0.0
  %687 = vmatprep.subr.mxu0 0.0
  %688 = vmatpush1.msra.mxu0 0.0
  %689 = vmatprep.subr.mxu0 0.0
  %690 = vmatpush1.msra.mxu0 0.0
  %691 = vmatprep.subr.mxu0 0.0
  %692 = vmatpush1.msra.mxu0 0.0
  %693 = vmatprep.mubr.f32.mxu0 0.0
  %694 = vmatmul.mubr.f32.gmra.mrb[0].mxu0 %v627
  %v695 = vpop.f32.mrb[0].mxu0
  %v696 = vadd.f32 0.0, %v695
  %v697 = vpop.f32.mrb[0].mxu0
  %698 = vdwg.mxu0
  %v699 = vadd.f32 %v270, %v696
  %v700 = vxor.u32 %v699, 2147483648
  %v701 = vmul.f32 %v700, 1.442695
  %v702 = vpow.pop %v701
  %v703 = vadd.f32 %v702, 1.0
  %v704 = vrcp.pop %v703
  %v705 = vmul.f32 1.0, %v704
  %v706 = vtanh.pop %v699
  %v707 = vmul.f32 %v705, %v611
  %709 = vrot.lane.b32.xlu0 %v706, 64
  %v710 = vpop.permute.xlu0 %709
  %v712 = vmul.f32 %v705, %v710
  %714 = vrot.lane.b32.xlu0 %v712, 32
  %v715 = vpop.permute.xlu0 %714
  %v717 = vadd.f32 %v707, %v715
  %v718 = vtanh.pop %v717
  %720 = vrot.lane.b32.xlu0 %v718, 64
  %v721 = vpop.permute.xlu0 %720
  %v723 = vmul.f32 %v705, %v721
  %v724 = vsel %vm293, 1, 0
  %725 = vset.pattern.permute.xlu0 0
  %726 = vperm.xlu0 %725, %v724
  %v727 = vpop.permute.xlu0 %726
  %vm728 = vcmp.eq.s32.totalorder %v727, 1
  %v729 = vsel %vm728, %v723, %v623
  %731 = vrot.lane.b32.xlu0 %v723, 32
  %v732 = vpop.permute.xlu0 %731
  %v733 = vsel %vm114, %v732, 0
  %735 = vmatprep.subr.mxu0 0.0
  %736 = vmatpush1.msra.mxu0 %v298
  %737 = vmatprep.subr.mxu0 0.0
  %738 = vmatpush1.msra.mxu0 %v299
  %739 = vmatprep.subr.mxu0 0.0
  %740 = vmatpush1.msra.mxu0 %v300
  %741 = vmatprep.subr.mxu0 0.0
  %742 = vmatpush1.msra.mxu0 %v301
  %743 = vmatprep.subr.mxu0 0.0
  %744 = vmatpush1.msra.mxu0 0.0
  %745 = vmatprep.subr.mxu0 0.0
  %746 = vmatpush1.msra.mxu0 0.0
  %747 = vmatprep.subr.mxu0 0.0
  %748 = vmatpush1.msra.mxu0 0.0
  %749 = vmatprep.subr.mxu0 0.0
  %750 = vmatpush1.msra.mxu0 0.0
  %751 = vmatprep.subr.mxu0 0.0
  %752 = vmatpush1.msra.mxu0 0.0
  %753 = vmatprep.subr.mxu0 0.0
  %754 = vmatpush1.msra.mxu0 0.0
  %755 = vmatprep.subr.mxu0 0.0
  %756 = vmatpush1.msra.mxu0 0.0
  %757 = vmatprep.subr.mxu0 0.0
  %758 = vmatpush1.msra.mxu0 0.0
  %759 = vmatprep.subr.mxu0 0.0
  %760 = vmatpush1.msra.mxu0 0.0
  %761 = vmatprep.subr.mxu0 0.0
  %762 = vmatpush1.msra.mxu0 0.0
  %763 = vmatprep.subr.mxu0 0.0
  %764 = vmatpush1.msra.mxu0 0.0
  %765 = vmatprep.subr.mxu0 0.0
  %766 = vmatpush1.msra.mxu0 0.0
  %767 = vmatprep.subr.mxu0 0.0
  %768 = vmatpush1.msra.mxu0 0.0
  %769 = vmatprep.subr.mxu0 0.0
  %770 = vmatpush1.msra.mxu0 0.0
  %771 = vmatprep.subr.mxu0 0.0
  %772 = vmatpush1.msra.mxu0 0.0
  %773 = vmatprep.subr.mxu0 0.0
  %774 = vmatpush1.msra.mxu0 0.0
  %775 = vmatprep.subr.mxu0 0.0
  %776 = vmatpush1.msra.mxu0 0.0
  %777 = vmatprep.subr.mxu0 0.0
  %778 = vmatpush1.msra.mxu0 0.0
  %779 = vmatprep.subr.mxu0 0.0
  %780 = vmatpush1.msra.mxu0 0.0
  %781 = vmatprep.subr.mxu0 0.0
  %782 = vmatpush1.msra.mxu0 0.0
  %783 = vmatprep.subr.mxu0 0.0
  %784 = vmatpush1.msra.mxu0 0.0
  %785 = vmatprep.subr.mxu0 0.0
  %786 = vmatpush1.msra.mxu0 0.0
  %787 = vmatprep.subr.mxu0 0.0
  %788 = vmatpush1.msra.mxu0 0.0
  %789 = vmatprep.subr.mxu0 0.0
  %790 = vmatpush1.msra.mxu0 0.0
  %791 = vmatprep.subr.mxu0 0.0
  %792 = vmatpush1.msra.mxu0 0.0
  %793 = vmatprep.subr.mxu0 0.0
  %794 = vmatpush1.msra.mxu0 0.0
  %795 = vmatprep.subr.mxu0 0.0
  %796 = vmatpush1.msra.mxu0 0.0
  %797 = vmatprep.subr.mxu0 0.0
  %798 = vmatpush1.msra.mxu0 0.0
  %799 = vmatprep.mubr.f32.mxu0 0.0
  %800 = vmatmul.mubr.f32.gmra.mrb[0].mxu0 %v733
  %v801 = vpop.f32.mrb[0].mxu0
  %v802 = vadd.f32 0.0, %v801
  %v803 = vpop.f32.mrb[0].mxu0
  %804 = vdwg.mxu0
  %v805 = vadd.f32 %v275, %v802
  %v806 = vxor.u32 %v805, 2147483648
  %v807 = vmul.f32 %v806, 1.442695
  %v808 = vpow.pop %v807
  %v809 = vadd.f32 %v808, 1.0
  %v810 = vrcp.pop %v809
  %v811 = vmul.f32 1.0, %v810
  %v812 = vtanh.pop %v805
  %v813 = vmul.f32 %v811, %v717
  %815 = vrot.lane.b32.xlu0 %v812, 64
  %v816 = vpop.permute.xlu0 %815
  %v818 = vmul.f32 %v811, %v816
  %820 = vrot.lane.b32.xlu0 %v818, 32
  %v821 = vpop.permute.xlu0 %820
  %v823 = vadd.f32 %v813, %v821
  %v824 = vtanh.pop %v823
  %826 = vrot.lane.b32.xlu0 %v824, 64
  %v827 = vpop.permute.xlu0 %826
  %v829 = vmul.f32 %v811, %v827
  %v830 = vsel %vm294, 1, 0
  %831 = vset.pattern.permute.xlu0 0
  %832 = vperm.xlu0 %831, %v830
  %v833 = vpop.permute.xlu0 %832
  %vm834 = vcmp.eq.s32.totalorder %v833, 1
  %v835 = vsel %vm834, %v829, %v729
  %837 = vrot.lane.b32.xlu0 %v829, 32
  %v838 = vpop.permute.xlu0 %837
  %v839 = vsel %vm114, %v838, 0
  %841 = vmatprep.subr.mxu0 0.0
  %842 = vmatpush1.msra.mxu0 %v298
  %843 = vmatprep.subr.mxu0 0.0
  %844 = vmatpush1.msra.mxu0 %v299
  %845 = vmatprep.subr.mxu0 0.0
  %846 = vmatpush1.msra.mxu0 %v300
  %847 = vmatprep.subr.mxu0 0.0
  %848 = vmatpush1.msra.mxu0 %v301
  %849 = vmatprep.subr.mxu0 0.0
  %850 = vmatpush1.msra.mxu0 0.0
  %851 = vmatprep.subr.mxu0 0.0
  %852 = vmatpush1.msra.mxu0 0.0
  %853 = vmatprep.subr.mxu0 0.0
  %854 = vmatpush1.msra.mxu0 0.0
  %855 = vmatprep.subr.mxu0 0.0
  %856 = vmatpush1.msra.mxu0 0.0
  %857 = vmatprep.subr.mxu0 0.0
  %858 = vmatpush1.msra.mxu0 0.0
  %859 = vmatprep.subr.mxu0 0.0
  %860 = vmatpush1.msra.mxu0 0.0
  %861 = vmatprep.subr.mxu0 0.0
  %862 = vmatpush1.msra.mxu0 0.0
  %863 = vmatprep.subr.mxu0 0.0
  %864 = vmatpush1.msra.mxu0 0.0
  %865 = vmatprep.subr.mxu0 0.0
  %866 = vmatpush1.msra.mxu0 0.0
  %867 = vmatprep.subr.mxu0 0.0
  %868 = vmatpush1.msra.mxu0 0.0
  %869 = vmatprep.subr.mxu0 0.0
  %870 = vmatpush1.msra.mxu0 0.0
  %871 = vmatprep.subr.mxu0 0.0
  %872 = vmatpush1.msra.mxu0 0.0
  %873 = vmatprep.subr.mxu0 0.0
  %874 = vmatpush1.msra.mxu0 0.0
  %875 = vmatprep.subr.mxu0 0.0
  %876 = vmatpush1.msra.mxu0 0.0
  %877 = vmatprep.subr.mxu0 0.0
  %878 = vmatpush1.msra.mxu0 0.0
  %879 = vmatprep.subr.mxu0 0.0
  %880 = vmatpush1.msra.mxu0 0.0
  %881 = vmatprep.subr.mxu0 0.0
  %882 = vmatpush1.msra.mxu0 0.0
  %883 = vmatprep.subr.mxu0 0.0
  %884 = vmatpush1.msra.mxu0 0.0
  %885 = vmatprep.subr.mxu0 0.0
  %886 = vmatpush1.msra.mxu0 0.0
  %887 = vmatprep.subr.mxu0 0.0
  %888 = vmatpush1.msra.mxu0 0.0
  %889 = vmatprep.subr.mxu0 0.0
  %890 = vmatpush1.msra.mxu0 0.0
  %891 = vmatprep.subr.mxu0 0.0
  %892 = vmatpush1.msra.mxu0 0.0
  %893 = vmatprep.subr.mxu0 0.0
  %894 = vmatpush1.msra.mxu0 0.0
  %895 = vmatprep.subr.mxu0 0.0
  %896 = vmatpush1.msra.mxu0 0.0
  %897 = vmatprep.subr.mxu0 0.0
  %898 = vmatpush1.msra.mxu0 0.0
  %899 = vmatprep.subr.mxu0 0.0
  %900 = vmatpush1.msra.mxu0 0.0
  %901 = vmatprep.subr.mxu0 0.0
  %902 = vmatpush1.msra.mxu0 0.0
  %903 = vmatprep.subr.mxu0 0.0
  %904 = vmatpush1.msra.mxu0 0.0
  %905 = vmatprep.mubr.f32.mxu0 0.0
  %906 = vmatmul.mubr.f32.gmra.mrb[0].mxu0 %v839
  %v907 = vpop.f32.mrb[0].mxu0
  %v908 = vadd.f32 0.0, %v907
  %v909 = vpop.f32.mrb[0].mxu0
  %910 = vdwg.mxu0
  %v911 = vadd.f32 %v278, %v908
  %v912 = vxor.u32 %v911, 2147483648
  %v913 = vmul.f32 %v912, 1.442695
  %v914 = vpow.pop %v913
  %v915 = vadd.f32 %v914, 1.0
  %v916 = vrcp.pop %v915
  %v917 = vmul.f32 1.0, %v916
  %v918 = vtanh.pop %v911
  %v919 = vmul.f32 %v917, %v823
  %921 = vrot.lane.b32.xlu0 %v918, 64
  %v922 = vpop.permute.xlu0 %921
  %v924 = vmul.f32 %v917, %v922
  %926 = vrot.lane.b32.xlu0 %v924, 32
  %v927 = vpop.permute.xlu0 %926
  %v929 = vadd.f32 %v919, %v927
  %v930 = vtanh.pop %v929
  %932 = vrot.lane.b32.xlu0 %v930, 64
  %v933 = vpop.permute.xlu0 %932
  %v935 = vmul.f32 %v917, %v933
  %v936 = vsel %vm295, 1, 0
  %937 = vset.pattern.permute.xlu0 0
  %938 = vperm.xlu0 %937, %v936
  %v939 = vpop.permute.xlu0 %938
  %vm940 = vcmp.eq.s32.totalorder %v939, 1
  %v941 = vsel %vm940, %v935, %v835
  %943 = vrot.lane.b32.xlu0 %v935, 32
  %v944 = vpop.permute.xlu0 %943
  %v945 = vsel %vm114, %v944, 0
  %947 = vmatprep.subr.mxu0 0.0
  %948 = vmatpush1.msra.mxu0 %v298
  %949 = vmatprep.subr.mxu0 0.0
  %950 = vmatpush1.msra.mxu0 %v299
  %951 = vmatprep.subr.mxu0 0.0
  %952 = vmatpush1.msra.mxu0 %v300
  %953 = vmatprep.subr.mxu0 0.0
  %954 = vmatpush1.msra.mxu0 %v301
  %955 = vmatprep.subr.mxu0 0.0
  %956 = vmatpush1.msra.mxu0 0.0
  %957 = vmatprep.subr.mxu0 0.0
  %958 = vmatpush1.msra.mxu0 0.0
  %959 = vmatprep.subr.mxu0 0.0
  %960 = vmatpush1.msra.mxu0 0.0
  %961 = vmatprep.subr.mxu0 0.0
  %962 = vmatpush1.msra.mxu0 0.0
  %963 = vmatprep.subr.mxu0 0.0
  %964 = vmatpush1.msra.mxu0 0.0
  %965 = vmatprep.subr.mxu0 0.0
  %966 = vmatpush1.msra.mxu0 0.0
  %967 = vmatprep.subr.mxu0 0.0
  %968 = vmatpush1.msra.mxu0 0.0
  %969 = vmatprep.subr.mxu0 0.0
  %970 = vmatpush1.msra.mxu0 0.0
  %971 = vmatprep.subr.mxu0 0.0
  %972 = vmatpush1.msra.mxu0 0.0
  %973 = vmatprep.subr.mxu0 0.0
  %974 = vmatpush1.msra.mxu0 0.0
  %975 = vmatprep.subr.mxu0 0.0
  %976 = vmatpush1.msra.mxu0 0.0
  %977 = vmatprep.subr.mxu0 0.0
  %978 = vmatpush1.msra.mxu0 0.0
  %979 = vmatprep.subr.mxu0 0.0
  %980 = vmatpush1.msra.mxu0 0.0
  %981 = vmatprep.subr.mxu0 0.0
  %982 = vmatpush1.msra.mxu0 0.0
  %983 = vmatprep.subr.mxu0 0.0
  %984 = vmatpush1.msra.mxu0 0.0
  %985 = vmatprep.subr.mxu0 0.0
  %986 = vmatpush1.msra.mxu0 0.0
  %987 = vmatprep.subr.mxu0 0.0
  %988 = vmatpush1.msra.mxu0 0.0
  %989 = vmatprep.subr.mxu0 0.0
  %990 = vmatpush1.msra.mxu0 0.0
  %991 = vmatprep.subr.mxu0 0.0
  %992 = vmatpush1.msra.mxu0 0.0
  %993 = vmatprep.subr.mxu0 0.0
  %994 = vmatpush1.msra.mxu0 0.0
  %995 = vmatprep.subr.mxu0 0.0
  %996 = vmatpush1.msra.mxu0 0.0
  %997 = vmatprep.subr.mxu0 0.0
  %998 = vmatpush1.msra.mxu0 0.0
  %999 = vmatprep.subr.mxu0 0.0
  %1000 = vmatpush1.msra.mxu0 0.0
  %1001 = vmatprep.subr.mxu0 0.0
  %1002 = vmatpush1.msra.mxu0 0.0
  %1003 = vmatprep.subr.mxu0 0.0
  %1004 = vmatpush1.msra.mxu0 0.0
  %1005 = vmatprep.subr.mxu0 0.0
  %1006 = vmatpush1.msra.mxu0 0.0
  %1007 = vmatprep.subr.mxu0 0.0
  %1008 = vmatpush1.msra.mxu0 0.0
  %1009 = vmatprep.subr.mxu0 0.0
  %1010 = vmatpush1.msra.mxu0 0.0
  %1011 = vmatprep.mubr.f32.mxu0 0.0
  %1012 = vmatmul.mubr.f32.gmra.mrb[0].mxu0 %v945
  %v1013 = vpop.f32.mrb[0].mxu0
  %v1014 = vadd.f32 0.0, %v1013
  %v1015 = vpop.f32.mrb[0].mxu0
  %1016 = vdwg.mxu0
  %v1017 = vadd.f32 %v283, %v1014
  %v1018 = vxor.u32 %v1017, 2147483648
  %v1019 = vmul.f32 %v1018, 1.442695
  %v1020 = vpow.pop %v1019
  %v1021 = vadd.f32 %v1020, 1.0
  %v1022 = vrcp.pop %v1021
  %v1023 = vmul.f32 1.0, %v1022
  %v1024 = vtanh.pop %v1017
  %v1025 = vmul.f32 %v1023, %v929
  %1027 = vrot.lane.b32.xlu0 %v1024, 64
  %v1028 = vpop.permute.xlu0 %1027
  %v1030 = vmul.f32 %v1023, %v1028
  %1032 = vrot.lane.b32.xlu0 %v1030, 32
  %v1033 = vpop.permute.xlu0 %1032
  %v1035 = vadd.f32 %v1025, %v1033
  %v1036 = vtanh.pop %v1035
  %1038 = vrot.lane.b32.xlu0 %v1036, 64
  %v1039 = vpop.permute.xlu0 %1038
  %v1041 = vmul.f32 %v1023, %v1039
  %v1042 = vsel %vm296, 1, 0
  %1043 = vset.pattern.permute.xlu0 0
  %1044 = vperm.xlu0 %1043, %v1042
  %v1045 = vpop.permute.xlu0 %1044
  %vm1046 = vcmp.eq.s32.totalorder %v1045, 1
  %v1047 = vsel %vm1046, %v1041, %v941
  %1049 = vrot.lane.b32.xlu0 %v1041, 32
  %v1050 = vpop.permute.xlu0 %1049
  %v1051 = vsel %vm114, %v1050, 0
  %1053 = vmatprep.subr.mxu0 0.0
  %1054 = vmatpush1.msra.mxu0 %v298
  %1055 = vmatprep.subr.mxu0 0.0
  %1056 = vmatpush1.msra.mxu0 %v299
  %1057 = vmatprep.subr.mxu0 0.0
  %1058 = vmatpush1.msra.mxu0 %v300
  %1059 = vmatprep.subr.mxu0 0.0
  %1060 = vmatpush1.msra.mxu0 %v301
  %1061 = vmatprep.subr.mxu0 0.0
  %1062 = vmatpush1.msra.mxu0 0.0
  %1063 = vmatprep.subr.mxu0 0.0
  %1064 = vmatpush1.msra.mxu0 0.0
  %1065 = vmatprep.subr.mxu0 0.0
  %1066 = vmatpush1.msra.mxu0 0.0
  %1067 = vmatprep.subr.mxu0 0.0
  %1068 = vmatpush1.msra.mxu0 0.0
  %1069 = vmatprep.subr.mxu0 0.0
  %1070 = vmatpush1.msra.mxu0 0.0
  %1071 = vmatprep.subr.mxu0 0.0
  %1072 = vmatpush1.msra.mxu0 0.0
  %1073 = vmatprep.subr.mxu0 0.0
  %1074 = vmatpush1.msra.mxu0 0.0
  %1075 = vmatprep.subr.mxu0 0.0
  %1076 = vmatpush1.msra.mxu0 0.0
  %1077 = vmatprep.subr.mxu0 0.0
  %1078 = vmatpush1.msra.mxu0 0.0
  %1079 = vmatprep.subr.mxu0 0.0
  %1080 = vmatpush1.msra.mxu0 0.0
  %1081 = vmatprep.subr.mxu0 0.0
  %1082 = vmatpush1.msra.mxu0 0.0
  %1083 = vmatprep.subr.mxu0 0.0
  %1084 = vmatpush1.msra.mxu0 0.0
  %1085 = vmatprep.subr.mxu0 0.0
  %1086 = vmatpush1.msra.mxu0 0.0
  %1087 = vmatprep.subr.mxu0 0.0
  %1088 = vmatpush1.msra.mxu0 0.0
  %1089 = vmatprep.subr.mxu0 0.0
  %1090 = vmatpush1.msra.mxu0 0.0
  %1091 = vmatprep.subr.mxu0 0.0
  %1092 = vmatpush1.msra.mxu0 0.0
  %1093 = vmatprep.subr.mxu0 0.0
  %1094 = vmatpush1.msra.mxu0 0.0
  %1095 = vmatprep.subr.mxu0 0.0
  %1096 = vmatpush1.msra.mxu0 0.0
  %1097 = vmatprep.subr.mxu0 0.0
  %1098 = vmatpush1.msra.mxu0 0.0
  %1099 = vmatprep.subr.mxu0 0.0
  %1100 = vmatpush1.msra.mxu0 0.0
  %1101 = vmatprep.subr.mxu0 0.0
  %1102 = vmatpush1.msra.mxu0 0.0
  %1103 = vmatprep.subr.mxu0 0.0
  %1104 = vmatpush1.msra.mxu0 0.0
  %1105 = vmatprep.subr.mxu0 0.0
  %1106 = vmatpush1.msra.mxu0 0.0
  %1107 = vmatprep.subr.mxu0 0.0
  %1108 = vmatpush1.msra.mxu0 0.0
  %1109 = vmatprep.subr.mxu0 0.0
  %1110 = vmatpush1.msra.mxu0 0.0
  %1111 = vmatprep.subr.mxu0 0.0
  %1112 = vmatpush1.msra.mxu0 0.0
  %1113 = vmatprep.subr.mxu0 0.0
  %1114 = vmatpush1.msra.mxu0 0.0
  %1115 = vmatprep.subr.mxu0 0.0
  %1116 = vmatpush1.msra.mxu0 0.0
  %1117 = vmatprep.mubr.f32.mxu0 0.0
  %1118 = vmatmul.mubr.f32.gmra.mrb[0].mxu0 %v1051
  %v1119 = vpop.f32.mrb[0].mxu0
  %v1120 = vadd.f32 0.0, %v1119
  %v1121 = vpop.f32.mrb[0].mxu0
  %1122 = vdwg.mxu0
  %v1123 = vadd.f32 %v286, %v1120
  %v1124 = vxor.u32 %v1123, 2147483648
  %v1125 = vmul.f32 %v1124, 1.442695
  %v1126 = vpow.pop %v1125
  %v1127 = vadd.f32 %v1126, 1.0
  %v1128 = vrcp.pop %v1127
  %v1129 = vmul.f32 1.0, %v1128
  %v1130 = vtanh.pop %v1123
  %v1131 = vmul.f32 %v1129, %v1035
  %1133 = vrot.lane.b32.xlu0 %v1130, 64
  %v1134 = vpop.permute.xlu0 %1133
  %v1136 = vmul.f32 %v1129, %v1134
  %1138 = vrot.lane.b32.xlu0 %v1136, 32
  %v1139 = vpop.permute.xlu0 %1138
  %v1141 = vadd.f32 %v1131, %v1139
  %v1142 = vtanh.pop %v1141
  %1144 = vrot.lane.b32.xlu0 %v1142, 64
  %v1145 = vpop.permute.xlu0 %1144
  %v1147 = vmul.f32 %v1129, %v1145
  %v1148 = vsel %vm297, 1, 0
  %1149 = vset.pattern.permute.xlu0 0
  %1150 = vperm.xlu0 %1149, %v1148
  %v1151 = vpop.permute.xlu0 %1150
  %vm1152 = vcmp.eq.s32.totalorder %v1151, 1
  %v1153 = vsel %vm1152, %v1147, %v1047
  %v1154 = vld [vmem:[%s8] sm:$0xff]
  %v1155 = vld [vmem:[%s8 + $0x8] sm:$0xff]
  %v1156 = vld [vmem:[%s8 + $0x10] sm:$0xff]
  %v1157 = vld [vmem:[%s8 + $0x18] sm:$0xff]
  %v1158 = vld [vmem:[%s9] sm:$0x1]
  %v1160 = vlaneseq
  %v1161 = vshrl.u32 %v1160, 7
  %v1162 = vsub.s32 0, %v1161
  %v1163 = vrot.slane %v1158, %v1162
  %1166 = vrot.lane.b32.xlu0 %v1153, 32
  %v1167 = vpop.permute.xlu0 %1166
  %v1168 = vsel %vm114, %v1167, 0
  %1170 = vmatprep.subr.mxu0 0.0
  %1171 = vmatpush1.msra.mxu0 %v1154
  %1172 = vmatprep.subr.mxu0 0.0
  %1173 = vmatpush1.msra.mxu0 %v1155
  %1174 = vmatprep.subr.mxu0 0.0
  %1175 = vmatpush1.msra.mxu0 %v1156
  %1176 = vmatprep.subr.mxu0 0.0
  %1177 = vmatpush1.msra.mxu0 %v1157
  %1178 = vmatprep.subr.mxu0 0.0
  %1179 = vmatpush1.msra.mxu0 0.0
  %1180 = vmatprep.subr.mxu0 0.0
  %1181 = vmatpush1.msra.mxu0 0.0
  %1182 = vmatprep.subr.mxu0 0.0
  %1183 = vmatpush1.msra.mxu0 0.0
  %1184 = vmatprep.subr.mxu0 0.0
  %1185 = vmatpush1.msra.mxu0 0.0
  %1186 = vmatprep.subr.mxu0 0.0
  %1187 = vmatpush1.msra.mxu0 0.0
  %1188 = vmatprep.subr.mxu0 0.0
  %1189 = vmatpush1.msra.mxu0 0.0
  %1190 = vmatprep.subr.mxu0 0.0
  %1191 = vmatpush1.msra.mxu0 0.0
  %1192 = vmatprep.subr.mxu0 0.0
  %1193 = vmatpush1.msra.mxu0 0.0
  %1194 = vmatprep.subr.mxu0 0.0
  %1195 = vmatpush1.msra.mxu0 0.0
  %1196 = vmatprep.subr.mxu0 0.0
  %1197 = vmatpush1.msra.mxu0 0.0
  %1198 = vmatprep.subr.mxu0 0.0
  %1199 = vmatpush1.msra.mxu0 0.0
  %1200 = vmatprep.subr.mxu0 0.0
  %1201 = vmatpush1.msra.mxu0 0.0
  %1202 = vmatprep.subr.mxu0 0.0
  %1203 = vmatpush1.msra.mxu0 0.0
  %1204 = vmatprep.subr.mxu0 0.0
  %1205 = vmatpush1.msra.mxu0 0.0
  %1206 = vmatprep.subr.mxu0 0.0
  %1207 = vmatpush1.msra.mxu0 0.0
  %1208 = vmatprep.subr.mxu0 0.0
  %1209 = vmatpush1.msra.mxu0 0.0
  %1210 = vmatprep.subr.mxu0 0.0
  %1211 = vmatpush1.msra.mxu0 0.0
  %1212 = vmatprep.subr.mxu0 0.0
  %1213 = vmatpush1.msra.mxu0 0.0
  %1214 = vmatprep.subr.mxu0 0.0
  %1215 = vmatpush1.msra.mxu0 0.0
  %1216 = vmatprep.subr.mxu0 0.0
  %1217 = vmatpush1.msra.mxu0 0.0
  %1218 = vmatprep.subr.mxu0 0.0
  %1219 = vmatpush1.msra.mxu0 0.0
  %1220 = vmatprep.subr.mxu0 0.0
  %1221 = vmatpush1.msra.mxu0 0.0
  %1222 = vmatprep.subr.mxu0 0.0
  %1223 = vmatpush1.msra.mxu0 0.0
  %1224 = vmatprep.subr.mxu0 0.0
  %1225 = vmatpush1.msra.mxu0 0.0
  %1226 = vmatprep.subr.mxu0 0.0
  %1227 = vmatpush1.msra.mxu0 0.0
  %1228 = vmatprep.subr.mxu0 0.0
  %1229 = vmatpush1.msra.mxu0 0.0
  %1230 = vmatprep.subr.mxu0 0.0
  %1231 = vmatpush1.msra.mxu0 0.0
  %1232 = vmatprep.subr.mxu0 0.0
  %1233 = vmatpush1.msra.mxu0 0.0
  %1234 = vmatprep.mubr.f32.mxu0 0.0
  %1235 = vmatmul.mubr.f32.gmra.mrb[0].mxu0 %v1168
  %v1236 = vpop.f32.mrb[0].mxu0
  %v1237 = vadd.f32 %v1163, %v1236
  %v1238 = vpop.f32.mrb[0].mxu0
  %1239 = vdwg.mxu0
  %vm1240 = vcmask 15360
  %1241 = vst.msk [vmem:[%s10] sm:$0xff] %vm1240, %v1237
  // Predicated region
  $region42: #{tpu_custom_call.1} parent=0 // pred_check
    _
  $region43: #{tpu_custom_call.1} parent=0 // pred_check_branch
    %1243 = sbr.rel (0) target = $region45
  $region44: #{tpu_custom_call.1} parent=0 // pred_region
    _
  $region45: #{tpu_custom_call.1} parent=0 // pred_fallthru
    _
  // Predicated region
  $region46: #{tpu_custom_call.1} parent=0 // pred_check
    _
  $region47: #{tpu_custom_call.1} parent=0 // pred_check_branch
    %1245 = sbr.rel (0) target = $region49
  $region48: #{tpu_custom_call.1} parent=0 // pred_region
    _
  $region49: #{tpu_custom_call.1} parent=0 // pred_fallthru
    _

</llo_original>
